<compile_context>
chip_gen: v6e
topology: v6e:2x2x1
jax: 0.10.0
libtpu: 0.0.40
codegen_flags: <defaults>
</compile_context>

<pallas_src>
import functools
import math

import jax
import jax.numpy as jnp
from jax.experimental import pallas as pl
from jax.experimental.pallas import tpu as pltpu


def _rab_kernel(x_ref, ln1_g, ln1_b, w_qkv, b_qkv, w_o, b_o,
                ln2_g, ln2_b, w_fc, b_fc, w_pr, b_pr, o_ref,
                *, n_head, head_dim, d_model, l_valid):
    """One batch tile: x_ref / o_ref are (L, B_TILE, D)."""
    L, B, D = x_ref.shape
    f32 = jnp.float32
    bf16 = jnp.bfloat16

    # One in-VMEM relayout (L,B,D)->(B,L,D) so rows flatten as b*L+l and every
    # per-batch attention slice is a free major-axis slice.
    x = jnp.transpose(x_ref[...].astype(f32), (1, 0, 2))        # (B, L, D) f32
    xf = x.reshape(B * L, D)                                     # free reshape

    def layer_norm(v, g_ref, b_ref):                             # f32 LN, eps=1e-5
        mu = jnp.mean(v, axis=-1, keepdims=True)
        var = jnp.mean((v - mu) ** 2, axis=-1, keepdims=True)
        return ((v - mu) * jax.lax.rsqrt(var + 1e-5)
                * g_ref[...].astype(f32) + b_ref[...].astype(f32))

    # ---- attention branch ---------------------------------------------------
    h = layer_norm(xf, ln1_g, ln1_b)                             # (B*L, D)
    qkv = jnp.dot(h.astype(bf16), w_qkv[...],
                  preferred_element_type=f32) + b_qkv[...]        # (B*L, 3D)
    qkv = qkv.reshape(B, L, 3 * n_head, head_dim)

    if l_valid < L:
        # padded key rows get -1e30 before softmax (exp -> 0)
        key_mask = jnp.where(
            jax.lax.broadcasted_iota(jnp.int32, (1, 1, L), 2) >= l_valid,
            jnp.float32(-1e30), jnp.float32(0.0))

    attn_rows = []
    for b in range(B):                                           # small unrolled loop
        # (L, 3H, hd) -> (3H, L, hd): single 3-D transpose, minor dim fixed.
        qkvh = jnp.transpose(qkv[b], (1, 0, 2))
        qh = qkvh[:n_head].astype(bf16)                          # scale pre-folded
        kh = qkvh[n_head:2 * n_head].astype(bf16)
        vh = qkvh[2 * n_head:].astype(bf16)

        s = jnp.einsum("hqd,hkd->hqk", qh, kh,
                       preferred_element_type=f32)               # (H, L, L) f32
        if l_valid < L:
            s = s + key_mask
        s = s - jnp.max(s, axis=-1, keepdims=True)
        e = jnp.exp(s)
        p = e * pl.reciprocal(jnp.sum(e, axis=-1, keepdims=True), approx=False)

        ctx = jnp.einsum("hqk,hkd->hqd", p.astype(bf16), vh,
                         preferred_element_type=f32)             # (H, L, hd)
        attn_rows.append(jnp.transpose(ctx, (1, 0, 2)).reshape(L, d_model))

    attn = attn_rows[0] if B == 1 else jnp.concatenate(attn_rows, axis=0)  # (B*L, D)
    attn = jnp.dot(attn.astype(bf16), w_o[...],
                   preferred_element_type=f32) + b_o[...]
    x1 = xf + attn

    # ---- MLP branch ----------------------------------------------------------
    h2 = layer_norm(x1, ln2_g, ln2_b)
    ff = jnp.dot(h2.astype(bf16), w_fc[...],
                 preferred_element_type=f32) + b_fc[...]         # (B*L, 4D)
    ff = ff * jax.nn.sigmoid(1.702 * ff)                          # QuickGELU (f32)
    ff = jnp.dot(ff.astype(bf16), w_pr[...],
                 preferred_element_type=f32) + b_pr[...]

    out = (x1 + ff).reshape(B, L, D)
    o_ref[...] = jnp.transpose(out, (1, 0, 2)).astype(o_ref.dtype)   # back to (L, B, D)


def _pick_batch_tile(N, L):
    """Batch elements per grid step.

    Must be == N or a multiple of 8 dividing N (second-minor block-dim rule).
    Aim for B_TILE*L ~ 512 rows to fill the MXU while keeping >= 2 grid steps
    so both v7x TensorCores get work."""
    target = max(8, -(-512 // max(L, 1)))
    best = None
    b = 8
    while b <= min(N // 2, target):
        if N % b == 0:
            best = b
        b += 8
    return best if best is not None else N


def _vmem_limit_bytes(L, B, D, H, params):
    """Scoped-VMEM budget: weights + double-buffered I/O tiles + f32 temporaries."""
    weight_bytes = sum(int(p.size) * p.dtype.itemsize for p in params.values())
    io_bytes = 2 * 2 * B * L * D * 4                      # x and out blocks, 2 bufs, f32
    act_bytes = 4 * (B * L * (2 * D + 3 * D + 4 * D + D)  # x/residual, qkv, mlp hidden, attn
                     + 2 * H * L * L)                     # scores + probs (one batch element)
    total = weight_bytes + io_bytes + act_bytes + (8 << 20)   # Mosaic scratch headroom
    try:
        cap = int(pltpu.get_tpu_info().vmem_capacity_bytes * 0.85)
    except Exception:  # pragma: no cover - conservative fallback
        cap = 96 << 20
    return int(min(max(total, 32 << 20), cap))


def prepare_kernel_params(params, n_head):
    """One-time host-side prep: fold 1/sqrt(head_dim) into the q third of w_qkv/b_qkv."""
    d_model = params["w_o"].shape[1]
    scale = 1.0 / math.sqrt(d_model // n_head)
    w_qkv, b_qkv = params["w_qkv"], params["b_qkv"]
    wq = (w_qkv[:, :d_model].astype(jnp.float32) * scale).astype(w_qkv.dtype)
    bq = b_qkv[:, :d_model] * scale
    kp = dict(params)
    kp["w_qkv"] = jnp.concatenate([wq, w_qkv[:, d_model:]], axis=1)
    kp["b_qkv"] = jnp.concatenate([bq, b_qkv[:, d_model:]], axis=1)
    return kp


def residual_attention_block(x, kparams, n_head):
    """x: (L, N, D) float32 (PyTorch MHA layout); kparams from prepare_kernel_params."""
    L, N, D = x.shape
    head_dim = D // n_head

    # Pad the sequence axis to a sublane multiple; padded keys are masked in-kernel.
    L_pad = ((L + 7) // 8) * 8
    if L_pad != L:
        x = jnp.pad(x, ((0, L_pad - L), (0, 0), (0, 0)))

    b_tile = _pick_batch_tile(N, L_pad)
    grid = (N // b_tile,)

    kernel = functools.partial(_rab_kernel, n_head=n_head, head_dim=head_dim,
                               d_model=D, l_valid=L)

    # Weights / biases: whole-array VMEM residents (single copy, no per-step
    # double-buffering of constant operands).
    vmem_resident = pl.BlockSpec(memory_space=pltpu.MemorySpace.VMEM)
    io_spec = pl.BlockSpec((L_pad, b_tile, D), lambda b: (0, b, 0))

    out = pl.pallas_call(
        kernel,
        out_shape=jax.ShapeDtypeStruct((L_pad, N, D), x.dtype),
        grid_spec=pltpu.PrefetchScalarGridSpec(
            num_scalar_prefetch=0,
            grid=grid,
            in_specs=[io_spec] + [vmem_resident] * 12,
            out_specs=io_spec,
        ),
        compiler_params=pltpu.CompilerParams(
            dimension_semantics=("parallel",),               # batch tiles -> megacore
            vmem_limit_bytes=_vmem_limit_bytes(L_pad, b_tile, D, n_head, kparams),
        ),
    )(x,
      kparams["ln1_g"], kparams["ln1_b"],
      kparams["w_qkv"], kparams["b_qkv"],
      kparams["w_o"], kparams["b_o"],
      kparams["ln2_g"], kparams["ln2_b"],
      kparams["w_fc"], kparams["b_fc"],
      kparams["w_pr"], kparams["b_pr"])

    return out[:L] if L_pad != L else out


def reference_forward(x, params, n_head):
    """Pure-JAX f32 reference replicating PyTorch semantics (raw, unscaled params)."""
    L, N, D = x.shape
    hd = D // n_head
    f32 = lambda t: t.astype(jnp.float32)

    def ln(v, g, b):
        mu = v.mean(-1, keepdims=True)
        var = ((v - mu) ** 2).mean(-1, keepdims=True)
        return (v - mu) / jnp.sqrt(var + 1e-5) * g + b

    h = ln(x, params["ln1_g"][0], params["ln1_b"][0])          # (L, N, D)
    qkv = jnp.einsum("lnd,de->lne", h, f32(params["w_qkv"])) + params["b_qkv"][0]
    q, k, v = qkv[..., :D], qkv[..., D:2 * D], qkv[..., 2 * D:]
    q = q.reshape(L, N, n_head, hd) / math.sqrt(hd)
    k = k.reshape(L, N, n_head, hd)
    v = v.reshape(L, N, n_head, hd)
    s = jnp.einsum("qnhd,knhd->nhqk", q, k)
    p = jax.nn.softmax(s, axis=-1)
    a = jnp.einsum("nhqk,knhd->qnhd", p, v).reshape(L, N, D)
    a = jnp.einsum("lnd,de->lne", a, f32(params["w_o"])) + params["b_o"][0]
    x = x + a
    h2 = ln(x, params["ln2_g"][0], params["ln2_b"][0])
    ff = jnp.einsum("lnd,de->lne", h2, f32(params["w_fc"])) + params["b_fc"][0]
    ff = ff * jax.nn.sigmoid(1.702 * ff)
    ff = jnp.einsum("lnd,de->lne", ff, f32(params["w_pr"])) + params["b_pr"][0]
    return x + ff


def make_params(key, d_model):
    ks = jax.random.split(key, 6)
    s = 0.02
    f32, bf16 = jnp.float32, jnp.bfloat16

    # Weights stored pre-transposed (in_features, out_features) so kernel does
    # x @ W; stored in bf16 (native MXU dtype, half the HBM/VMEM bytes).
    def w(k, shape):
        return (s * jax.random.normal(k, shape, f32)).astype(bf16)

    return {
        "ln1_g": jnp.ones((1, d_model), f32),
        "ln1_b": jnp.zeros((1, d_model), f32),
        "w_qkv": w(ks[0], (d_model, 3 * d_model)),
        "b_qkv": s * jax.random.normal(ks[1], (1, 3 * d_model), f32),
        "w_o":   w(ks[2], (d_model, d_model)),
        "b_o":   s * jax.random.normal(ks[3], (1, d_model), f32),
        "ln2_g": jnp.ones((1, d_model), f32),
        "ln2_b": jnp.zeros((1, d_model), f32),
        "w_fc":  w(ks[4], (d_model, 4 * d_model)),
        "b_fc":  jnp.zeros((1, 4 * d_model), f32),
        "w_pr":  w(ks[5], (4 * d_model, d_model)),
        "b_pr":  jnp.zeros((1, d_model), f32),
    }


if __name__ == "__main__":
    L, N, D, H = 8, 2, 32, 4     # seq, batch, d_model, n_head
    key = jax.random.PRNGKey(0)
    kx, kp = jax.random.split(key)
    x = jax.random.normal(kx, (L, N, D), jnp.float32)   # PyTorch MHA layout (L, N, D)
    params = make_params(kp, D)
    kparams = prepare_kernel_params(params, H)          # one-time host-side fold

    out = jax.block_until_ready(residual_attention_block(x, kparams, H))
    ref = reference_forward(x, params, H)

    assert out.shape == (L, N, D)
    # bf16 MXU operands => slightly looser tolerance than a pure-f32 path;
    # weights themselves are identical (bf16) in both kernel and reference.
    assert jnp.allclose(out, ref, atol=1e-2, rtol=1e-2), "mismatch vs JAX reference"
    print("KERNEL_OK")
</pallas_src>

<mosaic_0001>
module attributes {stable_mosaic.version = 11 : i64} {
  func.func @_rab_kernel(%arg0: i32, %arg1: memref<8x2x32xf32, #tpu.memory_space<vmem>>, %arg2: memref<1x32xf32, #tpu.memory_space<vmem>>, %arg3: memref<1x32xf32, #tpu.memory_space<vmem>>, %arg4: memref<32x96xbf16, #tpu.memory_space<vmem>>, %arg5: memref<1x96xf32, #tpu.memory_space<vmem>>, %arg6: memref<32x32xbf16, #tpu.memory_space<vmem>>, %arg7: memref<1x32xf32, #tpu.memory_space<vmem>>, %arg8: memref<1x32xf32, #tpu.memory_space<vmem>>, %arg9: memref<1x32xf32, #tpu.memory_space<vmem>>, %arg10: memref<32x128xbf16, #tpu.memory_space<vmem>>, %arg11: memref<1x128xf32, #tpu.memory_space<vmem>>, %arg12: memref<128x32xbf16, #tpu.memory_space<vmem>>, %arg13: memref<1x32xf32, #tpu.memory_space<vmem>>, %arg14: memref<8x2x32xf32, #tpu.memory_space<vmem>>) attributes {dimension_semantics = [#tpu.dimension_semantics<parallel>], iteration_bounds = array<i64: 1>, scalar_prefetch = 0 : i64, scratch_operands = 0 : i64, tpu.core_type = #tpu.core_type<tc>, window_params = [{transform_indices = @transform_0, window_bounds = array<i64: 8, 2, 32>}, {pipeline_mode = #tpu.pipeline_mode<synchronous>, transform_indices = @transform_1, window_bounds = array<i64: 1, 32>}, {pipeline_mode = #tpu.pipeline_mode<synchronous>, transform_indices = @transform_2, window_bounds = array<i64: 1, 32>}, {pipeline_mode = #tpu.pipeline_mode<synchronous>, transform_indices = @transform_3, window_bounds = array<i64: 32, 96>}, {pipeline_mode = #tpu.pipeline_mode<synchronous>, transform_indices = @transform_4, window_bounds = array<i64: 1, 96>}, {pipeline_mode = #tpu.pipeline_mode<synchronous>, transform_indices = @transform_5, window_bounds = array<i64: 32, 32>}, {pipeline_mode = #tpu.pipeline_mode<synchronous>, transform_indices = @transform_6, window_bounds = array<i64: 1, 32>}, {pipeline_mode = #tpu.pipeline_mode<synchronous>, transform_indices = @transform_7, window_bounds = array<i64: 1, 32>}, {pipeline_mode = #tpu.pipeline_mode<synchronous>, transform_indices = @transform_8, window_bounds = array<i64: 1, 32>}, {pipeline_mode = #tpu.pipeline_mode<synchronous>, transform_indices = @transform_9, window_bounds = array<i64: 32, 128>}, {pipeline_mode = #tpu.pipeline_mode<synchronous>, transform_indices = @transform_10, window_bounds = array<i64: 1, 128>}, {pipeline_mode = #tpu.pipeline_mode<synchronous>, transform_indices = @transform_11, window_bounds = array<i64: 128, 32>}, {pipeline_mode = #tpu.pipeline_mode<synchronous>, transform_indices = @transform_12, window_bounds = array<i64: 1, 32>}, {transform_indices = @transform_13, window_bounds = array<i64: 8, 2, 32>}]} {
    %c0 = arith.constant 0 : index
    %c0_0 = arith.constant 0 : index
    %c0_1 = arith.constant 0 : index
    %0 = vector.load %arg1[%c0, %c0_0, %c0_1] : memref<8x2x32xf32, #tpu.memory_space<vmem>>, vector<8x2x32xf32>
    %1 = tpu.transpose %0, [1, 0, 2] : vector<8x2x32xf32> -> vector<2x8x32xf32>
    %2 = vector.shape_cast %1 : vector<2x8x32xf32> to vector<16x32xf32>
    %cst = arith.constant dense<0.000000e+00> : vector<16xf32>
    %3 = vector.multi_reduction <add>, %2, %cst [1] : vector<16x32xf32> to vector<16xf32>
    %4 = vector.shape_cast %3 : vector<16xf32> to vector<16x1xf32>
    %cst_2 = arith.constant 3.200000e+01 : f32
    %5 = vector.broadcast %cst_2 : f32 to vector<16x1xf32>
    %6 = arith.divf %4, %5 : vector<16x1xf32>
    %7 = vector.broadcast %6 : vector<16x1xf32> to vector<16x32xf32>
    %8 = arith.subf %2, %7 : vector<16x32xf32>
    %9 = arith.mulf %8, %8 : vector<16x32xf32>
    %cst_3 = arith.constant dense<0.000000e+00> : vector<16xf32>
    %10 = vector.multi_reduction <add>, %9, %cst_3 [1] : vector<16x32xf32> to vector<16xf32>
    %11 = vector.shape_cast %10 : vector<16xf32> to vector<16x1xf32>
    %cst_4 = arith.constant 3.200000e+01 : f32
    %12 = vector.broadcast %cst_4 : f32 to vector<16x1xf32>
    %13 = arith.divf %11, %12 : vector<16x1xf32>
    %14 = vector.broadcast %6 : vector<16x1xf32> to vector<16x32xf32>
    %15 = arith.subf %2, %14 : vector<16x32xf32>
    %cst_5 = arith.constant 9.99999974E-6 : f32
    %16 = vector.broadcast %cst_5 : f32 to vector<16x1xf32>
    %17 = arith.addf %13, %16 : vector<16x1xf32>
    %18 = math.rsqrt %17 : vector<16x1xf32>
    %19 = vector.broadcast %18 : vector<16x1xf32> to vector<16x32xf32>
    %20 = arith.mulf %15, %19 : vector<16x32xf32>
    %c0_6 = arith.constant 0 : index
    %c0_7 = arith.constant 0 : index
    %21 = vector.load %arg2[%c0_6, %c0_7] : memref<1x32xf32, #tpu.memory_space<vmem>>, vector<1x32xf32>
    %22 = vector.broadcast %21 : vector<1x32xf32> to vector<16x32xf32>
    %23 = arith.mulf %20, %22 : vector<16x32xf32>
    %c0_8 = arith.constant 0 : index
    %c0_9 = arith.constant 0 : index
    %24 = vector.load %arg3[%c0_8, %c0_9] : memref<1x32xf32, #tpu.memory_space<vmem>>, vector<1x32xf32>
    %25 = vector.broadcast %24 : vector<1x32xf32> to vector<16x32xf32>
    %26 = arith.addf %23, %25 : vector<16x32xf32>
    %27 = arith.truncf %26 : vector<16x32xf32> to vector<16x32xbf16>
    %c0_10 = arith.constant 0 : index
    %c0_11 = arith.constant 0 : index
    %28 = vector.load %arg4[%c0_10, %c0_11] : memref<32x96xbf16, #tpu.memory_space<vmem>>, vector<32x96xbf16>
    %cst_12 = arith.constant dense<0.000000e+00> : vector<16x96xf32>
    %29 = tpu.matmul %27, %28, %cst_12 {dimension_numbers = #tpu.dot_dimension_numbers<[1], [0], [0], [1], [0, 0, 1, 1], [], []>} : vector<16x32xbf16>, vector<32x96xbf16>, vector<16x96xf32> -> vector<16x96xf32>
    %c0_13 = arith.constant 0 : index
    %c0_14 = arith.constant 0 : index
    %30 = vector.load %arg5[%c0_13, %c0_14] : memref<1x96xf32, #tpu.memory_space<vmem>>, vector<1x96xf32>
    %31 = vector.broadcast %30 : vector<1x96xf32> to vector<16x96xf32>
    %32 = arith.addf %29, %31 : vector<16x96xf32>
    %33 = vector.shape_cast %32 : vector<16x96xf32> to vector<2x8x12x8xf32>
    %34 = vector.extract_strided_slice %33 {offsets = [0, 0, 0, 0], sizes = [1, 8, 12, 8], strides = [1, 1, 1, 1]} : vector<2x8x12x8xf32> to vector<1x8x12x8xf32>
    %35 = vector.shape_cast %34 : vector<1x8x12x8xf32> to vector<8x12x8xf32>
    %36 = tpu.transpose %35, [1, 0, 2] : vector<8x12x8xf32> -> vector<12x8x8xf32>
    %37 = vector.extract_strided_slice %36 {offsets = [0, 0, 0], sizes = [4, 8, 8], strides = [1, 1, 1]} : vector<12x8x8xf32> to vector<4x8x8xf32>
    %38 = arith.truncf %37 : vector<4x8x8xf32> to vector<4x8x8xbf16>
    %39 = vector.extract_strided_slice %36 {offsets = [4, 0, 0], sizes = [4, 8, 8], strides = [1, 1, 1]} : vector<12x8x8xf32> to vector<4x8x8xf32>
    %40 = arith.truncf %39 : vector<4x8x8xf32> to vector<4x8x8xbf16>
    %41 = vector.extract_strided_slice %36 {offsets = [8, 0, 0], sizes = [4, 8, 8], strides = [1, 1, 1]} : vector<12x8x8xf32> to vector<4x8x8xf32>
    %42 = arith.truncf %41 : vector<4x8x8xf32> to vector<4x8x8xbf16>
    "tpu.trace_start"() <{level = 10 : i32, message = "hqd,hkd->hqk"}> : () -> ()
    %cst_15 = arith.constant dense<0.000000e+00> : vector<4x8x8xf32>
    %43 = tpu.matmul %38, %40, %cst_15 {dimension_numbers = #tpu.dot_dimension_numbers<[2], [2], [1], [1], [0, 0, 0, 1, 1, 1], [0], [0]>} : vector<4x8x8xbf16>, vector<4x8x8xbf16>, vector<4x8x8xf32> -> vector<4x8x8xf32>
    "tpu.trace_stop"() : () -> ()
    %cst_16 = arith.constant dense<0xFF800000> : vector<4x8xf32>
    %44 = vector.multi_reduction <maximumf>, %43, %cst_16 [2] : vector<4x8x8xf32> to vector<4x8xf32>
    %45 = vector.shape_cast %44 : vector<4x8xf32> to vector<4x8x1xf32>
    %46 = vector.broadcast %45 : vector<4x8x1xf32> to vector<4x8x8xf32>
    %47 = arith.subf %43, %46 : vector<4x8x8xf32>
    %48 = math.exp %47 : vector<4x8x8xf32>
    %cst_17 = arith.constant dense<0.000000e+00> : vector<4x8xf32>
    %49 = vector.multi_reduction <add>, %48, %cst_17 [2] : vector<4x8x8xf32> to vector<4x8xf32>
    %50 = vector.shape_cast %49 : vector<4x8xf32> to vector<4x8x1xf32>
    %51 = tpu.reciprocal %50 : vector<4x8x1xf32> -> vector<4x8x1xf32>
    %52 = vector.broadcast %51 : vector<4x8x1xf32> to vector<4x8x8xf32>
    %53 = arith.mulf %48, %52 : vector<4x8x8xf32>
    %54 = arith.truncf %53 : vector<4x8x8xf32> to vector<4x8x8xbf16>
    "tpu.trace_start"() <{level = 10 : i32, message = "hqk,hkd->hqd"}> : () -> ()
    %cst_18 = arith.constant dense<0.000000e+00> : vector<4x8x8xf32>
    %55 = tpu.matmul %54, %42, %cst_18 {dimension_numbers = #tpu.dot_dimension_numbers<[2], [1], [1], [2], [0, 0, 0, 1, 1, 2], [0], [0]>} : vector<4x8x8xbf16>, vector<4x8x8xbf16>, vector<4x8x8xf32> -> vector<4x8x8xf32>
    "tpu.trace_stop"() : () -> ()
    %56 = tpu.transpose %55, [1, 0, 2] : vector<4x8x8xf32> -> vector<8x4x8xf32>
    %57 = vector.shape_cast %56 : vector<8x4x8xf32> to vector<8x32xf32>
    %58 = vector.extract_strided_slice %33 {offsets = [1, 0, 0, 0], sizes = [1, 8, 12, 8], strides = [1, 1, 1, 1]} : vector<2x8x12x8xf32> to vector<1x8x12x8xf32>
    %59 = vector.shape_cast %58 : vector<1x8x12x8xf32> to vector<8x12x8xf32>
    %60 = tpu.transpose %59, [1, 0, 2] : vector<8x12x8xf32> -> vector<12x8x8xf32>
    %61 = vector.extract_strided_slice %60 {offsets = [0, 0, 0], sizes = [4, 8, 8], strides = [1, 1, 1]} : vector<12x8x8xf32> to vector<4x8x8xf32>
    %62 = arith.truncf %61 : vector<4x8x8xf32> to vector<4x8x8xbf16>
    %63 = vector.extract_strided_slice %60 {offsets = [4, 0, 0], sizes = [4, 8, 8], strides = [1, 1, 1]} : vector<12x8x8xf32> to vector<4x8x8xf32>
    %64 = arith.truncf %63 : vector<4x8x8xf32> to vector<4x8x8xbf16>
    %65 = vector.extract_strided_slice %60 {offsets = [8, 0, 0], sizes = [4, 8, 8], strides = [1, 1, 1]} : vector<12x8x8xf32> to vector<4x8x8xf32>
    %66 = arith.truncf %65 : vector<4x8x8xf32> to vector<4x8x8xbf16>
    "tpu.trace_start"() <{level = 10 : i32, message = "hqd,hkd->hqk"}> : () -> ()
    %cst_19 = arith.constant dense<0.000000e+00> : vector<4x8x8xf32>
    %67 = tpu.matmul %62, %64, %cst_19 {dimension_numbers = #tpu.dot_dimension_numbers<[2], [2], [1], [1], [0, 0, 0, 1, 1, 1], [0], [0]>} : vector<4x8x8xbf16>, vector<4x8x8xbf16>, vector<4x8x8xf32> -> vector<4x8x8xf32>
    "tpu.trace_stop"() : () -> ()
    %cst_20 = arith.constant dense<0xFF800000> : vector<4x8xf32>
    %68 = vector.multi_reduction <maximumf>, %67, %cst_20 [2] : vector<4x8x8xf32> to vector<4x8xf32>
    %69 = vector.shape_cast %68 : vector<4x8xf32> to vector<4x8x1xf32>
    %70 = vector.broadcast %69 : vector<4x8x1xf32> to vector<4x8x8xf32>
    %71 = arith.subf %67, %70 : vector<4x8x8xf32>
    %72 = math.exp %71 : vector<4x8x8xf32>
    %cst_21 = arith.constant dense<0.000000e+00> : vector<4x8xf32>
    %73 = vector.multi_reduction <add>, %72, %cst_21 [2] : vector<4x8x8xf32> to vector<4x8xf32>
    %74 = vector.shape_cast %73 : vector<4x8xf32> to vector<4x8x1xf32>
    %75 = tpu.reciprocal %74 : vector<4x8x1xf32> -> vector<4x8x1xf32>
    %76 = vector.broadcast %75 : vector<4x8x1xf32> to vector<4x8x8xf32>
    %77 = arith.mulf %72, %76 : vector<4x8x8xf32>
    %78 = arith.truncf %77 : vector<4x8x8xf32> to vector<4x8x8xbf16>
    "tpu.trace_start"() <{level = 10 : i32, message = "hqk,hkd->hqd"}> : () -> ()
    %cst_22 = arith.constant dense<0.000000e+00> : vector<4x8x8xf32>
    %79 = tpu.matmul %78, %66, %cst_22 {dimension_numbers = #tpu.dot_dimension_numbers<[2], [1], [1], [2], [0, 0, 0, 1, 1, 2], [0], [0]>} : vector<4x8x8xbf16>, vector<4x8x8xbf16>, vector<4x8x8xf32> -> vector<4x8x8xf32>
    "tpu.trace_stop"() : () -> ()
    %80 = tpu.transpose %79, [1, 0, 2] : vector<4x8x8xf32> -> vector<8x4x8xf32>
    %81 = vector.shape_cast %80 : vector<8x4x8xf32> to vector<8x32xf32>
    %82 = tpu.concatenate %57, %81 in 0 : vector<8x32xf32>, vector<8x32xf32> -> vector<16x32xf32>
    %83 = arith.truncf %82 : vector<16x32xf32> to vector<16x32xbf16>
    %c0_23 = arith.constant 0 : index
    %c0_24 = arith.constant 0 : index
    %84 = vector.load %arg6[%c0_23, %c0_24] : memref<32x32xbf16, #tpu.memory_space<vmem>>, vector<32x32xbf16>
    %cst_25 = arith.constant dense<0.000000e+00> : vector<16x32xf32>
    %85 = tpu.matmul %83, %84, %cst_25 {dimension_numbers = #tpu.dot_dimension_numbers<[1], [0], [0], [1], [0, 0, 1, 1], [], []>} : vector<16x32xbf16>, vector<32x32xbf16>, vector<16x32xf32> -> vector<16x32xf32>
    %c0_26 = arith.constant 0 : index
    %c0_27 = arith.constant 0 : index
    %86 = vector.load %arg7[%c0_26, %c0_27] : memref<1x32xf32, #tpu.memory_space<vmem>>, vector<1x32xf32>
    %87 = vector.broadcast %86 : vector<1x32xf32> to vector<16x32xf32>
    %88 = arith.addf %85, %87 : vector<16x32xf32>
    %89 = arith.addf %2, %88 : vector<16x32xf32>
    %cst_28 = arith.constant dense<0.000000e+00> : vector<16xf32>
    %90 = vector.multi_reduction <add>, %89, %cst_28 [1] : vector<16x32xf32> to vector<16xf32>
    %91 = vector.shape_cast %90 : vector<16xf32> to vector<16x1xf32>
    %cst_29 = arith.constant 3.200000e+01 : f32
    %92 = vector.broadcast %cst_29 : f32 to vector<16x1xf32>
    %93 = arith.divf %91, %92 : vector<16x1xf32>
    %94 = vector.broadcast %93 : vector<16x1xf32> to vector<16x32xf32>
    %95 = arith.subf %89, %94 : vector<16x32xf32>
    %96 = arith.mulf %95, %95 : vector<16x32xf32>
    %cst_30 = arith.constant dense<0.000000e+00> : vector<16xf32>
    %97 = vector.multi_reduction <add>, %96, %cst_30 [1] : vector<16x32xf32> to vector<16xf32>
    %98 = vector.shape_cast %97 : vector<16xf32> to vector<16x1xf32>
    %cst_31 = arith.constant 3.200000e+01 : f32
    %99 = vector.broadcast %cst_31 : f32 to vector<16x1xf32>
    %100 = arith.divf %98, %99 : vector<16x1xf32>
    %101 = vector.broadcast %93 : vector<16x1xf32> to vector<16x32xf32>
    %102 = arith.subf %89, %101 : vector<16x32xf32>
    %cst_32 = arith.constant 9.99999974E-6 : f32
    %103 = vector.broadcast %cst_32 : f32 to vector<16x1xf32>
    %104 = arith.addf %100, %103 : vector<16x1xf32>
    %105 = math.rsqrt %104 : vector<16x1xf32>
    %106 = vector.broadcast %105 : vector<16x1xf32> to vector<16x32xf32>
    %107 = arith.mulf %102, %106 : vector<16x32xf32>
    %c0_33 = arith.constant 0 : index
    %c0_34 = arith.constant 0 : index
    %108 = vector.load %arg8[%c0_33, %c0_34] : memref<1x32xf32, #tpu.memory_space<vmem>>, vector<1x32xf32>
    %109 = vector.broadcast %108 : vector<1x32xf32> to vector<16x32xf32>
    %110 = arith.mulf %107, %109 : vector<16x32xf32>
    %c0_35 = arith.constant 0 : index
    %c0_36 = arith.constant 0 : index
    %111 = vector.load %arg9[%c0_35, %c0_36] : memref<1x32xf32, #tpu.memory_space<vmem>>, vector<1x32xf32>
    %112 = vector.broadcast %111 : vector<1x32xf32> to vector<16x32xf32>
    %113 = arith.addf %110, %112 : vector<16x32xf32>
    %114 = arith.truncf %113 : vector<16x32xf32> to vector<16x32xbf16>
    %c0_37 = arith.constant 0 : index
    %c0_38 = arith.constant 0 : index
    %115 = vector.load %arg10[%c0_37, %c0_38] : memref<32x128xbf16, #tpu.memory_space<vmem>>, vector<32x128xbf16>
    %cst_39 = arith.constant dense<0.000000e+00> : vector<16x128xf32>
    %116 = tpu.matmul %114, %115, %cst_39 {dimension_numbers = #tpu.dot_dimension_numbers<[1], [0], [0], [1], [0, 0, 1, 1], [], []>} : vector<16x32xbf16>, vector<32x128xbf16>, vector<16x128xf32> -> vector<16x128xf32>
    %c0_40 = arith.constant 0 : index
    %c0_41 = arith.constant 0 : index
    %117 = vector.load %arg11[%c0_40, %c0_41] : memref<1x128xf32, #tpu.memory_space<vmem>>, vector<1x128xf32>
    %118 = vector.broadcast %117 : vector<1x128xf32> to vector<16x128xf32>
    %119 = arith.addf %116, %118 : vector<16x128xf32>
    %cst_42 = arith.constant 1.702000e+00 : f32
    %120 = vector.broadcast %cst_42 : f32 to vector<16x128xf32>
    %121 = arith.mulf %120, %119 : vector<16x128xf32>
    %122 = arith.negf %121 : vector<16x128xf32>
    %123 = math.exp %122 : vector<16x128xf32>
    %cst_43 = arith.constant 1.000000e+00 : f32
    %124 = vector.broadcast %cst_43 : f32 to vector<16x128xf32>
    %125 = arith.addf %124, %123 : vector<16x128xf32>
    %126 = arith.divf %124, %125 : vector<16x128xf32>
    %127 = arith.mulf %119, %126 : vector<16x128xf32>
    %128 = arith.truncf %127 : vector<16x128xf32> to vector<16x128xbf16>
    %c0_44 = arith.constant 0 : index
    %c0_45 = arith.constant 0 : index
    %129 = vector.load %arg12[%c0_44, %c0_45] : memref<128x32xbf16, #tpu.memory_space<vmem>>, vector<128x32xbf16>
    %cst_46 = arith.constant dense<0.000000e+00> : vector<16x32xf32>
    %130 = tpu.matmul %128, %129, %cst_46 {dimension_numbers = #tpu.dot_dimension_numbers<[1], [0], [0], [1], [0, 0, 1, 1], [], []>} : vector<16x128xbf16>, vector<128x32xbf16>, vector<16x32xf32> -> vector<16x32xf32>
    %c0_47 = arith.constant 0 : index
    %c0_48 = arith.constant 0 : index
    %131 = vector.load %arg13[%c0_47, %c0_48] : memref<1x32xf32, #tpu.memory_space<vmem>>, vector<1x32xf32>
    %132 = vector.broadcast %131 : vector<1x32xf32> to vector<16x32xf32>
    %133 = arith.addf %130, %132 : vector<16x32xf32>
    %134 = arith.addf %89, %133 : vector<16x32xf32>
    %135 = vector.shape_cast %134 : vector<16x32xf32> to vector<2x8x32xf32>
    %136 = tpu.transpose %135, [1, 0, 2] : vector<2x8x32xf32> -> vector<8x2x32xf32>
    %c0_49 = arith.constant 0 : index
    %c0_50 = arith.constant 0 : index
    %c0_51 = arith.constant 0 : index
    %137 = vector.load %arg14[%c0_49, %c0_50, %c0_51] : memref<8x2x32xf32, #tpu.memory_space<vmem>>, vector<8x2x32xf32>
    tpu.vector_store %arg14[%c0_49, %c0_50, %c0_51], %136 {strides = array<i32>} : memref<8x2x32xf32, #tpu.memory_space<vmem>>, vector<8x2x32xf32>,
    return
  }
  func.func @transform_0(%arg0: i32) -> (i32, i32, i32) {
    %c0_i32 = arith.constant 0 : i32
    %c0_i32_0 = arith.constant 0 : i32
    %c0_i32_1 = arith.constant 0 : i32
    return %c0_i32, %arg0, %c0_i32_0 : i32, i32, i32
  }
  func.func @transform_1(%arg0: i32) -> (i32, i32) {
    %c0_i32 = arith.constant 0 : i32
    %c0_i32_0 = arith.constant 0 : i32
    %c0_i32_1 = arith.constant 0 : i32
    return %c0_i32, %c0_i32_0 : i32, i32
  }
  func.func @transform_2(%arg0: i32) -> (i32, i32) {
    %c0_i32 = arith.constant 0 : i32
    %c0_i32_0 = arith.constant 0 : i32
    %c0_i32_1 = arith.constant 0 : i32
    return %c0_i32, %c0_i32_0 : i32, i32
  }
  func.func @transform_3(%arg0: i32) -> (i32, i32) {
    %c0_i32 = arith.constant 0 : i32
    %c0_i32_0 = arith.constant 0 : i32
    %c0_i32_1 = arith.constant 0 : i32
    return %c0_i32, %c0_i32_0 : i32, i32
  }
  func.func @transform_4(%arg0: i32) -> (i32, i32) {
    %c0_i32 = arith.constant 0 : i32
    %c0_i32_0 = arith.constant 0 : i32
    %c0_i32_1 = arith.constant 0 : i32
    return %c0_i32, %c0_i32_0 : i32, i32
  }
  func.func @transform_5(%arg0: i32) -> (i32, i32) {
    %c0_i32 = arith.constant 0 : i32
    %c0_i32_0 = arith.constant 0 : i32
    %c0_i32_1 = arith.constant 0 : i32
    return %c0_i32, %c0_i32_0 : i32, i32
  }
  func.func @transform_6(%arg0: i32) -> (i32, i32) {
    %c0_i32 = arith.constant 0 : i32
    %c0_i32_0 = arith.constant 0 : i32
    %c0_i32_1 = arith.constant 0 : i32
    return %c0_i32, %c0_i32_0 : i32, i32
  }
  func.func @transform_7(%arg0: i32) -> (i32, i32) {
    %c0_i32 = arith.constant 0 : i32
    %c0_i32_0 = arith.constant 0 : i32
    %c0_i32_1 = arith.constant 0 : i32
    return %c0_i32, %c0_i32_0 : i32, i32
  }
  func.func @transform_8(%arg0: i32) -> (i32, i32) {
    %c0_i32 = arith.constant 0 : i32
    %c0_i32_0 = arith.constant 0 : i32
    %c0_i32_1 = arith.constant 0 : i32
    return %c0_i32, %c0_i32_0 : i32, i32
  }
  func.func @transform_9(%arg0: i32) -> (i32, i32) {
    %c0_i32 = arith.constant 0 : i32
    %c0_i32_0 = arith.constant 0 : i32
    %c0_i32_1 = arith.constant 0 : i32
    return %c0_i32, %c0_i32_0 : i32, i32
  }
  func.func @transform_10(%arg0: i32) -> (i32, i32) {
    %c0_i32 = arith.constant 0 : i32
    %c0_i32_0 = arith.constant 0 : i32
    %c0_i32_1 = arith.constant 0 : i32
    return %c0_i32, %c0_i32_0 : i32, i32
  }
  func.func @transform_11(%arg0: i32) -> (i32, i32) {
    %c0_i32 = arith.constant 0 : i32
    %c0_i32_0 = arith.constant 0 : i32
    %c0_i32_1 = arith.constant 0 : i32
    return %c0_i32, %c0_i32_0 : i32, i32
  }
  func.func @transform_12(%arg0: i32) -> (i32, i32) {
    %c0_i32 = arith.constant 0 : i32
    %c0_i32_0 = arith.constant 0 : i32
    %c0_i32_1 = arith.constant 0 : i32
    return %c0_i32, %c0_i32_0 : i32, i32
  }
  func.func @transform_13(%arg0: i32) -> (i32, i32, i32) {
    %c0_i32 = arith.constant 0 : i32
    %c0_i32_0 = arith.constant 0 : i32
    %c0_i32_1 = arith.constant 0 : i32
    return %c0_i32, %arg0, %c0_i32_0 : i32, i32, i32
  }
}

</mosaic_0001>

<llo_original>
// kernel: tpu_custom_call.1
$region0: #{tpu_custom_call.1}
  #allocation0 [shape = 'u32[]', space=smem, size = 0x4, offset = 0x4, fixed_abs, tag = 'smem constant byte address 0x4 - core index']
  #allocation1 [shape = 'u32[144,128]{1,0:T(1,128)}', space=vmem, size = 0x12000, scoped, tag = 'internal scratch']
  %s0 = inlined_call_operand.vmem [shape: f32[8,2,32], index: 0, kind: input, shape index: {}]
  %s1 = inlined_call_operand.vmem [shape: f32[1,32], index: 1, kind: input, shape index: {}]
  %s2 = inlined_call_operand.vmem [shape: f32[1,32], index: 2, kind: input, shape index: {}]
  %s3 = inlined_call_operand.vmem [shape: bf16[32,96], index: 3, kind: input, shape index: {}]
  %s4 = inlined_call_operand.vmem [shape: f32[1,96], index: 4, kind: input, shape index: {}]
  %s5 = inlined_call_operand.vmem [shape: bf16[32,32], index: 5, kind: input, shape index: {}]
  %s6 = inlined_call_operand.vmem [shape: f32[1,32], index: 6, kind: input, shape index: {}]
  %s7 = inlined_call_operand.vmem [shape: f32[1,32], index: 7, kind: input, shape index: {}]
  %s8 = inlined_call_operand.vmem [shape: f32[1,32], index: 8, kind: input, shape index: {}]
  %s9 = inlined_call_operand.vmem [shape: bf16[32,128], index: 9, kind: input, shape index: {}]
  %s10 = inlined_call_operand.vmem [shape: f32[1,128], index: 10, kind: input, shape index: {}]
  %s11 = inlined_call_operand.vmem [shape: bf16[128,32], index: 11, kind: input, shape index: {}]
  %s12 = inlined_call_operand.vmem [shape: f32[1,32], index: 12, kind: input, shape index: {}]
  %s13 = inlined_call_operand.hbm [shape: f32[8,2,32], index: 13, kind: output, shape index: {}]
  %s14 = sld [smem:[#allocation0]]
  $region62: #{tpu_custom_call.1} parent=0
    _
  %s16 = ssub.s32 1, %s14
  %s17 = scalar_select 0, %s16, %s14
  $region1: #{tpu_custom_call.1} parent=0
    #allocation2 [shape = 'u8[8192]{0}', space=vmem, size = 0x2000, scoped, tag = 'output window, operand 0, single buffered']
    #allocation3 [shape = 's32[1]{0}', space=sflag, size = 0x4, scoped, tag = 'scoped memory for tpu_custom_call.1']
    %18 = vsyncpa [#allocation3], 0
    // Predicated region
    $region2: #{tpu_custom_call.1} parent=1 // pred_check
      _
    $region3: #{tpu_custom_call.1} parent=1 // pred_check_branch
      %20 = sbr.rel (0) target = $region5
    $region4: #{tpu_custom_call.1} parent=1 // pred_region
      _
    $region5: #{tpu_custom_call.1} parent=1 // pred_fallthru
      _
    // Predicated region
    $region6: #{tpu_custom_call.1} parent=1 // pred_check
      _
    $region7: #{tpu_custom_call.1} parent=1 // pred_check_branch
      %22 = sbr.rel (0) target = $region9
    $region8: #{tpu_custom_call.1} parent=1 // pred_region
      _
    $region9: #{tpu_custom_call.1} parent=1 // pred_fallthru
      _
    // Predicated region
    $region10: #{tpu_custom_call.1} parent=1 // pred_check
      _
    $region11: #{tpu_custom_call.1} parent=1 // pred_check_branch
      %24 = sbr.rel (0) target = $region13
    $region12: #{tpu_custom_call.1} parent=1 // pred_region
      _
    $region13: #{tpu_custom_call.1} parent=1 // pred_fallthru
      _
    // Predicated region
    $region14: #{tpu_custom_call.1} parent=1 // pred_check
      _
    $region15: #{tpu_custom_call.1} parent=1 // pred_check_branch
      %26 = sbr.rel (0) target = $region17
    $region16: #{tpu_custom_call.1} parent=1 // pred_region
      _
    $region17: #{tpu_custom_call.1} parent=1 // pred_fallthru
      _
    // Predicated region
    $region18: #{tpu_custom_call.1} parent=1 // pred_check
      _
    $region19: #{tpu_custom_call.1} parent=1 // pred_check_branch
      %28 = sbr.rel (0) target = $region21
    $region20: #{tpu_custom_call.1} parent=1 // pred_region
      _
    $region21: #{tpu_custom_call.1} parent=1 // pred_fallthru
      _
    // Predicated region
    $region22: #{tpu_custom_call.1} parent=1 // pred_check
      _
    $region23: #{tpu_custom_call.1} parent=1 // pred_check_branch
      %30 = sbr.rel (0) target = $region25
    $region24: #{tpu_custom_call.1} parent=1 // pred_region
      _
    $region25: #{tpu_custom_call.1} parent=1 // pred_fallthru
      _
    // Predicated region
    $region26: #{tpu_custom_call.1} parent=1 // pred_check
      _
    $region27: #{tpu_custom_call.1} parent=1 // pred_check_branch
      %32 = sbr.rel (0) target = $region29
    $region28: #{tpu_custom_call.1} parent=1 // pred_region
      _
    $region29: #{tpu_custom_call.1} parent=1 // pred_fallthru
      _
    // Predicated region
    $region30: #{tpu_custom_call.1} parent=1 // pred_check
      _
    $region31: #{tpu_custom_call.1} parent=1 // pred_check_branch
      %34 = sbr.rel (0) target = $region33
    $region32: #{tpu_custom_call.1} parent=1 // pred_region
      _
    $region33: #{tpu_custom_call.1} parent=1 // pred_fallthru
      _
    // Predicated region
    $region34: #{tpu_custom_call.1} parent=1 // pred_check
      _
    $region35: #{tpu_custom_call.1} parent=1 // pred_check_branch
      %36 = sbr.rel (0) target = $region37
    $region36: #{tpu_custom_call.1} parent=1 // pred_region
      _
    $region37: #{tpu_custom_call.1} parent=1 // pred_fallthru
      _
    // Predicated region
    $region38: #{tpu_custom_call.1} parent=1 // pred_check
      _
    $region39: #{tpu_custom_call.1} parent=1 // pred_check_branch
      %38 = sbr.rel (0) target = $region41
    $region40: #{tpu_custom_call.1} parent=1 // pred_region
      _
    $region41: #{tpu_custom_call.1} parent=1 // pred_fallthru
      _
    // Predicated region
    $region42: #{tpu_custom_call.1} parent=1 // pred_check
      _
    $region43: #{tpu_custom_call.1} parent=1 // pred_check_branch
      %40 = sbr.rel (0) target = $region45
    $region44: #{tpu_custom_call.1} parent=1 // pred_region
      _
    $region45: #{tpu_custom_call.1} parent=1 // pred_fallthru
      _
    // Predicated region
    $region46: #{tpu_custom_call.1} parent=1 // pred_check
      _
    $region47: #{tpu_custom_call.1} parent=1 // pred_check_branch
      %42 = sbr.rel (0) target = $region49
    $region48: #{tpu_custom_call.1} parent=1 // pred_region
      _
    $region49: #{tpu_custom_call.1} parent=1 // pred_fallthru
      _
    // Predicated region
    $region50: #{tpu_custom_call.1} parent=1 // pred_check
      _
    $region51: #{tpu_custom_call.1} parent=1 // pred_check_branch
      %44 = sbr.rel (0) target = $region53
    $region52: #{tpu_custom_call.1} parent=1 // pred_region
      _
    $region53: #{tpu_custom_call.1} parent=1 // pred_fallthru
      _
    %v46 = vld [vmem:[%s0] sm:$0x3]
    %v47 = vld [vmem:[%s0 + $0x2] sm:$0x3]
    %v48 = vld [vmem:[%s0 + $0x4] sm:$0x3]
    %v49 = vld [vmem:[%s0 + $0x6] sm:$0x3]
    %v50 = vld [vmem:[%s0 + $0x8] sm:$0x3]
    %v51 = vld [vmem:[%s0 + $0xa] sm:$0x3]
    %v52 = vld [vmem:[%s0 + $0xc] sm:$0x3]
    %v53 = vld [vmem:[%s0 + $0xe] sm:$0x3]
    %v54 = vcombine.low %v46, %v48
    %v56 = vunpack.c.l.s4 1983009808
    %v57 = vunpack.c.0.s8 %v56
    %v58 = vlaneseq
    %v59 = vshrl.u32 %v58, 7
    %v60 = vsub.s32 %v57, %v59
    %v61 = vrot.slane %v54, %v60
    %v62 = vcombine.low %v47, %v49
    %v64 = vunpack.c.l.s4 1983009808
    %v65 = vunpack.c.0.s8 %v64
    %v66 = vlaneseq
    %v67 = vshrl.u32 %v66, 7
    %v68 = vsub.s32 %v65, %v67
    %v69 = vrot.slane %v62, %v68
    %v70 = vcombine.low %v50, %v52
    %v72 = vunpack.c.l.s4 1983009808
    %v73 = vunpack.c.0.s8 %v72
    %v74 = vlaneseq
    %v75 = vshrl.u32 %v74, 7
    %v76 = vsub.s32 %v73, %v75
    %v77 = vrot.slane %v70, %v76
    %v78 = vcombine.low %v51, %v53
    %v80 = vunpack.c.l.s4 1983009808
    %v81 = vunpack.c.0.s8 %v80
    %v82 = vlaneseq
    %v83 = vshrl.u32 %v82, 7
    %v84 = vsub.s32 %v81, %v83
    %v85 = vrot.slane %v78, %v84
    %v86 = vcombine.low %v61, %v69
    %v88 = vunpack.c.l.s4 1934713408
    %v89 = vunpack.c.0.s8 %v88
    %v90 = vlaneseq
    %v91 = vshrl.u32 %v90, 7
    %v92 = vsub.s32 %v89, %v91
    %v93 = vrot.slane %v86, %v92
    %v94 = vcombine.low %v77, %v85
    %v96 = vunpack.c.l.s4 1934713408
    %v97 = vunpack.c.0.s8 %v96
    %v98 = vlaneseq
    %v99 = vshrl.u32 %v98, 7
    %v100 = vsub.s32 %v97, %v99
    %v101 = vrot.slane %v94, %v100
    %v102 = vcombine.low %v93, %v101
    %v103 = vcombine.high %v93, %v101
    %vm104 = vcmask 261120
    %v105 = vsel %vm104, %v102, 0.0
    %106 = vadd.xlane.f32.xlu0 %v105
    %v107 = vpop.xlane.xlu0 %106
    %v108 = vsel %vm104, %v103, 0.0
    %109 = vadd.xlane.f32.xlu0 %v108
    %v110 = vpop.xlane.xlu0 %109
    %v111 = vrcp.pop 32.0
    %v112 = vmul.f32 %v107, %v111
    %v113 = vmul.f32 %v110, %v111
    %v114 = vsub.f32 %v102, %v112
    %v115 = vsub.f32 %v103, %v113
    %v116 = vmul.f32 %v114, %v114
    %v117 = vmul.f32 %v115, %v115
    %v118 = vsel %vm104, %v116, 0.0
    %119 = vadd.xlane.f32.xlu0 %v118
    %v120 = vpop.xlane.xlu0 %119
    %v121 = vsel %vm104, %v117, 0.0
    %122 = vadd.xlane.f32.xlu0 %v121
    %v123 = vpop.xlane.xlu0 %122
    %v124 = vmul.f32 %v120, %v111
    %v125 = vmul.f32 %v123, %v111
    %v126 = vadd.f32 %v124, 1e-05
    %v127 = vadd.f32 %v125, 1e-05
    %v128 = vrsqrt.pop %v126
    %v129 = vrsqrt.pop %v127
    %v130 = vmul.f32 %v114, %v128
    %v131 = vmul.f32 %v115, %v129
    %v132 = vld [vmem:[%s1] sm:$0x1]
    %v134 = vlaneseq
    %v135 = vshrl.u32 %v134, 7
    %v136 = vsub.s32 0, %v135
    %v137 = vrot.slane %v132, %v136
    %v139 = vmul.f32 %v130, %v137
    %v140 = vmul.f32 %v131, %v137
    %v141 = vld [vmem:[%s2] sm:$0x1]
    %v143 = vlaneseq
    %v144 = vshrl.u32 %v143, 7
    %v145 = vsub.s32 0, %v144
    %v146 = vrot.slane %v141, %v145
    %v148 = vadd.f32 %v139, %v146
    %v149 = vadd.f32 %v140, %v146
    %v150 = vpack.c.bf16 %v149, %v148
    %v151 = vld [vmem:[%s3] sm:$0xf]
    %v152 = vld [vmem:[%s3 + $0x4] sm:$0xf]
    %v153 = vld [vmem:[%s3 + $0x8] sm:$0xf]
    %v154 = vld [vmem:[%s3 + $0xc] sm:$0xf]
    %v155 = vld [vmem:[%s4] sm:$0x1]
    %v157 = vlaneseq
    %v158 = vshrl.u32 %v157, 7
    %v159 = vsub.s32 0, %v158
    %v160 = vrot.slane %v155, %v159
    %v166 = vunpack.c.l.b16 %v151
    %v167 = vunpack.c.l.b16 %v152
    %v168 = vunpack.c.l.b16 %v153
    %v169 = vunpack.c.l.b16 %v154
    %v170 = vpack.c.b16 %v167, %v166
    %v171 = vpack.c.b16 %v169, %v168
    %v175 = vsel %vm104, %v150, 0
    %177 = vmatprep.subr.bf16.mxu0 0
    %178 = vmatpush1.bf16.msra.mxu0 0
    %179 = vmatprep.subr.bf16.mxu0 0
    %180 = vmatpush1.bf16.msra.mxu0 0
    %181 = vmatprep.subr.bf16.mxu0 0
    %182 = vmatpush1.bf16.msra.mxu0 0
    %183 = vmatprep.subr.bf16.mxu0 0
    %184 = vmatpush1.bf16.msra.mxu0 0
    %185 = vmatprep.subr.bf16.mxu0 0
    %186 = vmatpush1.bf16.msra.mxu0 0
    %187 = vmatprep.subr.bf16.mxu0 0
    %188 = vmatpush1.bf16.msra.mxu0 0
    %189 = vmatprep.subr.bf16.mxu0 0
    %190 = vmatpush1.bf16.msra.mxu0 %v171
    %191 = vmatprep.subr.bf16.mxu0 0
    %192 = vmatpush1.bf16.msra.mxu0 %v170
    %193 = vmatprep.subr.bf16.mxu0 0
    %194 = vmatpush2.bf16.msra.mxu0 0
    %195 = vmatprep.subr.bf16.mxu0 0
    %196 = vmatpush2.bf16.msra.mxu0 0
    %197 = vmatprep.subr.bf16.mxu0 0
    %198 = vmatpush2.bf16.msra.mxu0 0
    %199 = vmatprep.subr.bf16.mxu0 0
    %200 = vmatpush2.bf16.msra.mxu0 0
    %201 = vmatprep.subr.bf16.mxu0 0
    %202 = vmatpush2.bf16.msra.mxu0 0
    %203 = vmatprep.subr.bf16.mxu0 0
    %204 = vmatpush2.bf16.msra.mxu0 0
    %205 = vmatprep.subr.bf16.mxu0 0
    %206 = vmatpush2.bf16.msra.mxu0 0
    %207 = vmatprep.subr.bf16.mxu0 0
    %208 = vmatpush2.bf16.msra.mxu0 0
    %209 = vmatprep.mubr.bf16.mxu0 0
    %210 = vmatmul.mubr.bf16.gmra.mxu0 %v175
    %v211 = vpop.f32.mrf.mxu0
    %v212 = vadd.f32 %v160, %v211
    %v213 = vpop.f32.mrf.mxu0
    %v214 = vpop.f32.mrf.mxu0
    %v215 = vadd.f32 %v160, %v214
    %v216 = vpop.f32.mrf.mxu0
    %217 = vdwg.mxu0
    %220 = vrot.lane.b32.xlu0 %v212, 120
    %v221 = vpop.permute.xlu0 %220
    %222 = vrot.lane.b32.xlu0 %v215, 120
    %v223 = vpop.permute.xlu0 %222
    %226 = vrot.lane.b32.xlu0 %v212, 112
    %v227 = vpop.permute.xlu0 %226
    %228 = vrot.lane.b32.xlu0 %v215, 112
    %v229 = vpop.permute.xlu0 %228
    %232 = vrot.lane.b32.xlu0 %v212, 104
    %v233 = vpop.permute.xlu0 %232
    %234 = vrot.lane.b32.xlu0 %v215, 104
    %v235 = vpop.permute.xlu0 %234
    %238 = vrot.lane.b32.xlu0 %v212, 96
    %v239 = vpop.permute.xlu0 %238
    %240 = vrot.lane.b32.xlu0 %v215, 96
    %v241 = vpop.permute.xlu0 %240
    %244 = vrot.lane.b32.xlu0 %v212, 88
    %v245 = vpop.permute.xlu0 %244
    %246 = vrot.lane.b32.xlu0 %v215, 88
    %v247 = vpop.permute.xlu0 %246
    %250 = vrot.lane.b32.xlu0 %v212, 80
    %v251 = vpop.permute.xlu0 %250
    %252 = vrot.lane.b32.xlu0 %v215, 80
    %v253 = vpop.permute.xlu0 %252
    %256 = vrot.lane.b32.xlu0 %v212, 72
    %v257 = vpop.permute.xlu0 %256
    %258 = vrot.lane.b32.xlu0 %v215, 72
    %v259 = vpop.permute.xlu0 %258
    %262 = vrot.lane.b32.xlu0 %v212, 64
    %v263 = vpop.permute.xlu0 %262
    %264 = vrot.lane.b32.xlu0 %v215, 64
    %v265 = vpop.permute.xlu0 %264
    %268 = vrot.lane.b32.xlu0 %v212, 56
    %v269 = vpop.permute.xlu0 %268
    %270 = vrot.lane.b32.xlu0 %v215, 56
    %v271 = vpop.permute.xlu0 %270
    %274 = vrot.lane.b32.xlu0 %v212, 48
    %v275 = vpop.permute.xlu0 %274
    %276 = vrot.lane.b32.xlu0 %v215, 48
    %v277 = vpop.permute.xlu0 %276
    %280 = vrot.lane.b32.xlu0 %v212, 40
    %v281 = vpop.permute.xlu0 %280
    %282 = vrot.lane.b32.xlu0 %v215, 40
    %v283 = vpop.permute.xlu0 %282
    %v286 = vcombine.low %v212, %v227
    %v287 = vcombine.high %v212, %v227
    %v289 = vunpack.c.l.s4 1983009808
    %v290 = vunpack.c.0.s8 %v289
    %v291 = vlaneseq
    %v292 = vshrl.u32 %v291, 7
    %v293 = vsub.s32 %v290, %v292
    %v294 = vrot.slane %v286, %v293
    %v296 = vunpack.c.l.s4 1983009808
    %v297 = vunpack.c.0.s8 %v296
    %v298 = vlaneseq
    %v299 = vshrl.u32 %v298, 7
    %v300 = vsub.s32 %v297, %v299
    %v301 = vrot.slane %v287, %v300
    %v302 = vcombine.low %v221, %v233
    %v303 = vcombine.high %v221, %v233
    %v305 = vunpack.c.l.s4 1983009808
    %v306 = vunpack.c.0.s8 %v305
    %v307 = vlaneseq
    %v308 = vshrl.u32 %v307, 7
    %v309 = vsub.s32 %v306, %v308
    %v310 = vrot.slane %v302, %v309
    %v312 = vunpack.c.l.s4 1983009808
    %v313 = vunpack.c.0.s8 %v312
    %v314 = vlaneseq
    %v315 = vshrl.u32 %v314, 7
    %v316 = vsub.s32 %v313, %v315
    %v317 = vrot.slane %v303, %v316
    %v318 = vcombine.low %v239, %v251
    %v319 = vcombine.high %v239, %v251
    %v321 = vunpack.c.l.s4 1983009808
    %v322 = vunpack.c.0.s8 %v321
    %v323 = vlaneseq
    %v324 = vshrl.u32 %v323, 7
    %v325 = vsub.s32 %v322, %v324
    %v326 = vrot.slane %v318, %v325
    %v328 = vunpack.c.l.s4 1983009808
    %v329 = vunpack.c.0.s8 %v328
    %v330 = vlaneseq
    %v331 = vshrl.u32 %v330, 7
    %v332 = vsub.s32 %v329, %v331
    %v333 = vrot.slane %v319, %v332
    %v334 = vcombine.low %v245, %v257
    %v335 = vcombine.high %v245, %v257
    %v337 = vunpack.c.l.s4 1983009808
    %v338 = vunpack.c.0.s8 %v337
    %v339 = vlaneseq
    %v340 = vshrl.u32 %v339, 7
    %v341 = vsub.s32 %v338, %v340
    %v342 = vrot.slane %v334, %v341
    %v344 = vunpack.c.l.s4 1983009808
    %v345 = vunpack.c.0.s8 %v344
    %v346 = vlaneseq
    %v347 = vshrl.u32 %v346, 7
    %v348 = vsub.s32 %v345, %v347
    %v349 = vrot.slane %v335, %v348
    %v350 = vcombine.low %v294, %v310
    %v351 = vcombine.high %v294, %v310
    %v353 = vunpack.c.l.s4 1934713408
    %v354 = vunpack.c.0.s8 %v353
    %v355 = vlaneseq
    %v356 = vshrl.u32 %v355, 7
    %v357 = vsub.s32 %v354, %v356
    %v358 = vrot.slane %v350, %v357
    %v360 = vunpack.c.l.s4 1934713408
    %v361 = vunpack.c.0.s8 %v360
    %v362 = vlaneseq
    %v363 = vshrl.u32 %v362, 7
    %v364 = vsub.s32 %v361, %v363
    %v365 = vrot.slane %v351, %v364
    %v366 = vcombine.low %v301, %v317
    %v367 = vcombine.high %v301, %v317
    %v369 = vunpack.c.l.s4 1934713408
    %v370 = vunpack.c.0.s8 %v369
    %v371 = vlaneseq
    %v372 = vshrl.u32 %v371, 7
    %v373 = vsub.s32 %v370, %v372
    %v374 = vrot.slane %v366, %v373
    %v376 = vunpack.c.l.s4 1934713408
    %v377 = vunpack.c.0.s8 %v376
    %v378 = vlaneseq
    %v379 = vshrl.u32 %v378, 7
    %v380 = vsub.s32 %v377, %v379
    %v381 = vrot.slane %v367, %v380
    %v382 = vcombine.low %v326, %v342
    %v383 = vcombine.high %v326, %v342
    %v385 = vunpack.c.l.s4 1934713408
    %v386 = vunpack.c.0.s8 %v385
    %v387 = vlaneseq
    %v388 = vshrl.u32 %v387, 7
    %v389 = vsub.s32 %v386, %v388
    %v390 = vrot.slane %v382, %v389
    %v392 = vunpack.c.l.s4 1934713408
    %v393 = vunpack.c.0.s8 %v392
    %v394 = vlaneseq
    %v395 = vshrl.u32 %v394, 7
    %v396 = vsub.s32 %v393, %v395
    %v397 = vrot.slane %v383, %v396
    %v398 = vcombine.low %v333, %v349
    %v399 = vcombine.high %v333, %v349
    %v401 = vunpack.c.l.s4 1934713408
    %v402 = vunpack.c.0.s8 %v401
    %v403 = vlaneseq
    %v404 = vshrl.u32 %v403, 7
    %v405 = vsub.s32 %v402, %v404
    %v406 = vrot.slane %v398, %v405
    %v408 = vunpack.c.l.s4 1934713408
    %v409 = vunpack.c.0.s8 %v408
    %v410 = vlaneseq
    %v411 = vshrl.u32 %v410, 7
    %v412 = vsub.s32 %v409, %v411
    %v413 = vrot.slane %v399, %v412
    %v414 = vcombine.low %v358, %v390
    %v415 = vcombine.high %v358, %v390
    %v416 = vcombine.low %v365, %v397
    %v417 = vcombine.high %v365, %v397
    %v418 = vcombine.low %v374, %v406
    %v419 = vcombine.high %v374, %v406
    %v420 = vcombine.low %v381, %v413
    %v421 = vcombine.high %v381, %v413
    %v422 = vcombine.low %v263, %v275
    %v423 = vcombine.high %v263, %v275
    %v425 = vunpack.c.l.s4 1983009808
    %v426 = vunpack.c.0.s8 %v425
    %v427 = vlaneseq
    %v428 = vshrl.u32 %v427, 7
    %v429 = vsub.s32 %v426, %v428
    %v430 = vrot.slane %v422, %v429
    %v432 = vunpack.c.l.s4 1983009808
    %v433 = vunpack.c.0.s8 %v432
    %v434 = vlaneseq
    %v435 = vshrl.u32 %v434, 7
    %v436 = vsub.s32 %v433, %v435
    %v437 = vrot.slane %v423, %v436
    %v438 = vcombine.low %v269, %v281
    %v439 = vcombine.high %v269, %v281
    %v441 = vunpack.c.l.s4 1983009808
    %v442 = vunpack.c.0.s8 %v441
    %v443 = vlaneseq
    %v444 = vshrl.u32 %v443, 7
    %v445 = vsub.s32 %v442, %v444
    %v446 = vrot.slane %v438, %v445
    %v448 = vunpack.c.l.s4 1983009808
    %v449 = vunpack.c.0.s8 %v448
    %v450 = vlaneseq
    %v451 = vshrl.u32 %v450, 7
    %v452 = vsub.s32 %v449, %v451
    %v453 = vrot.slane %v439, %v452
    %v454 = vcombine.low %v430, %v446
    %v455 = vcombine.high %v430, %v446
    %v457 = vunpack.c.l.s4 1934713408
    %v458 = vunpack.c.0.s8 %v457
    %v459 = vlaneseq
    %v460 = vshrl.u32 %v459, 7
    %v461 = vsub.s32 %v458, %v460
    %v462 = vrot.slane %v454, %v461
    %v464 = vunpack.c.l.s4 1934713408
    %v465 = vunpack.c.0.s8 %v464
    %v466 = vlaneseq
    %v467 = vshrl.u32 %v466, 7
    %v468 = vsub.s32 %v465, %v467
    %v469 = vrot.slane %v455, %v468
    %v470 = vcombine.low %v437, %v453
    %v471 = vcombine.high %v437, %v453
    %v473 = vunpack.c.l.s4 1934713408
    %v474 = vunpack.c.0.s8 %v473
    %v475 = vlaneseq
    %v476 = vshrl.u32 %v475, 7
    %v477 = vsub.s32 %v474, %v476
    %v478 = vrot.slane %v470, %v477
    %v480 = vunpack.c.l.s4 1934713408
    %v481 = vunpack.c.0.s8 %v480
    %v482 = vlaneseq
    %v483 = vshrl.u32 %v482, 7
    %v484 = vsub.s32 %v481, %v483
    %v485 = vrot.slane %v471, %v484
    %v486 = vcombine.high %v462, 0.0
    %v487 = vcombine.high %v469, 0.0
    %v488 = vcombine.high %v478, 0.0
    %v489 = vcombine.high %v485, 0.0
    %v490 = vcombine.low %v215, %v229
    %v491 = vcombine.high %v215, %v229
    %v493 = vunpack.c.l.s4 1983009808
    %v494 = vunpack.c.0.s8 %v493
    %v495 = vlaneseq
    %v496 = vshrl.u32 %v495, 7
    %v497 = vsub.s32 %v494, %v496
    %v498 = vrot.slane %v490, %v497
    %v500 = vunpack.c.l.s4 1983009808
    %v501 = vunpack.c.0.s8 %v500
    %v502 = vlaneseq
    %v503 = vshrl.u32 %v502, 7
    %v504 = vsub.s32 %v501, %v503
    %v505 = vrot.slane %v491, %v504
    %v506 = vcombine.low %v223, %v235
    %v507 = vcombine.high %v223, %v235
    %v509 = vunpack.c.l.s4 1983009808
    %v510 = vunpack.c.0.s8 %v509
    %v511 = vlaneseq
    %v512 = vshrl.u32 %v511, 7
    %v513 = vsub.s32 %v510, %v512
    %v514 = vrot.slane %v506, %v513
    %v516 = vunpack.c.l.s4 1983009808
    %v517 = vunpack.c.0.s8 %v516
    %v518 = vlaneseq
    %v519 = vshrl.u32 %v518, 7
    %v520 = vsub.s32 %v517, %v519
    %v521 = vrot.slane %v507, %v520
    %v522 = vcombine.low %v241, %v253
    %v523 = vcombine.high %v241, %v253
    %v525 = vunpack.c.l.s4 1983009808
    %v526 = vunpack.c.0.s8 %v525
    %v527 = vlaneseq
    %v528 = vshrl.u32 %v527, 7
    %v529 = vsub.s32 %v526, %v528
    %v530 = vrot.slane %v522, %v529
    %v532 = vunpack.c.l.s4 1983009808
    %v533 = vunpack.c.0.s8 %v532
    %v534 = vlaneseq
    %v535 = vshrl.u32 %v534, 7
    %v536 = vsub.s32 %v533, %v535
    %v537 = vrot.slane %v523, %v536
    %v538 = vcombine.low %v247, %v259
    %v539 = vcombine.high %v247, %v259
    %v541 = vunpack.c.l.s4 1983009808
    %v542 = vunpack.c.0.s8 %v541
    %v543 = vlaneseq
    %v544 = vshrl.u32 %v543, 7
    %v545 = vsub.s32 %v542, %v544
    %v546 = vrot.slane %v538, %v545
    %v548 = vunpack.c.l.s4 1983009808
    %v549 = vunpack.c.0.s8 %v548
    %v550 = vlaneseq
    %v551 = vshrl.u32 %v550, 7
    %v552 = vsub.s32 %v549, %v551
    %v553 = vrot.slane %v539, %v552
    %v554 = vcombine.low %v498, %v514
    %v555 = vcombine.high %v498, %v514
    %v557 = vunpack.c.l.s4 1934713408
    %v558 = vunpack.c.0.s8 %v557
    %v559 = vlaneseq
    %v560 = vshrl.u32 %v559, 7
    %v561 = vsub.s32 %v558, %v560
    %v562 = vrot.slane %v554, %v561
    %v564 = vunpack.c.l.s4 1934713408
    %v565 = vunpack.c.0.s8 %v564
    %v566 = vlaneseq
    %v567 = vshrl.u32 %v566, 7
    %v568 = vsub.s32 %v565, %v567
    %v569 = vrot.slane %v555, %v568
    %v570 = vcombine.low %v505, %v521
    %v571 = vcombine.high %v505, %v521
    %v573 = vunpack.c.l.s4 1934713408
    %v574 = vunpack.c.0.s8 %v573
    %v575 = vlaneseq
    %v576 = vshrl.u32 %v575, 7
    %v577 = vsub.s32 %v574, %v576
    %v578 = vrot.slane %v570, %v577
    %v580 = vunpack.c.l.s4 1934713408
    %v581 = vunpack.c.0.s8 %v580
    %v582 = vlaneseq
    %v583 = vshrl.u32 %v582, 7
    %v584 = vsub.s32 %v581, %v583
    %v585 = vrot.slane %v571, %v584
    %v586 = vcombine.low %v530, %v546
    %v587 = vcombine.high %v530, %v546
    %v589 = vunpack.c.l.s4 1934713408
    %v590 = vunpack.c.0.s8 %v589
    %v591 = vlaneseq
    %v592 = vshrl.u32 %v591, 7
    %v593 = vsub.s32 %v590, %v592
    %v594 = vrot.slane %v586, %v593
    %v596 = vunpack.c.l.s4 1934713408
    %v597 = vunpack.c.0.s8 %v596
    %v598 = vlaneseq
    %v599 = vshrl.u32 %v598, 7
    %v600 = vsub.s32 %v597, %v599
    %v601 = vrot.slane %v587, %v600
    %v602 = vcombine.low %v537, %v553
    %v603 = vcombine.high %v537, %v553
    %v605 = vunpack.c.l.s4 1934713408
    %v606 = vunpack.c.0.s8 %v605
    %v607 = vlaneseq
    %v608 = vshrl.u32 %v607, 7
    %v609 = vsub.s32 %v606, %v608
    %v610 = vrot.slane %v602, %v609
    %v612 = vunpack.c.l.s4 1934713408
    %v613 = vunpack.c.0.s8 %v612
    %v614 = vlaneseq
    %v615 = vshrl.u32 %v614, 7
    %v616 = vsub.s32 %v613, %v615
    %v617 = vrot.slane %v603, %v616
    %v618 = vcombine.low %v562, %v594
    %v619 = vcombine.high %v562, %v594
    %v620 = vcombine.low %v569, %v601
    %v621 = vcombine.high %v569, %v601
    %v622 = vcombine.low %v578, %v610
    %v623 = vcombine.high %v578, %v610
    %v624 = vcombine.low %v585, %v617
    %v625 = vcombine.high %v585, %v617
    %v626 = vcombine.low %v265, %v277
    %v627 = vcombine.high %v265, %v277
    %v629 = vunpack.c.l.s4 1983009808
    %v630 = vunpack.c.0.s8 %v629
    %v631 = vlaneseq
    %v632 = vshrl.u32 %v631, 7
    %v633 = vsub.s32 %v630, %v632
    %v634 = vrot.slane %v626, %v633
    %v636 = vunpack.c.l.s4 1983009808
    %v637 = vunpack.c.0.s8 %v636
    %v638 = vlaneseq
    %v639 = vshrl.u32 %v638, 7
    %v640 = vsub.s32 %v637, %v639
    %v641 = vrot.slane %v627, %v640
    %v642 = vcombine.low %v271, %v283
    %v643 = vcombine.high %v271, %v283
    %v645 = vunpack.c.l.s4 1983009808
    %v646 = vunpack.c.0.s8 %v645
    %v647 = vlaneseq
    %v648 = vshrl.u32 %v647, 7
    %v649 = vsub.s32 %v646, %v648
    %v650 = vrot.slane %v642, %v649
    %v652 = vunpack.c.l.s4 1983009808
    %v653 = vunpack.c.0.s8 %v652
    %v654 = vlaneseq
    %v655 = vshrl.u32 %v654, 7
    %v656 = vsub.s32 %v653, %v655
    %v657 = vrot.slane %v643, %v656
    %v658 = vcombine.low %v634, %v650
    %v659 = vcombine.high %v634, %v650
    %v661 = vunpack.c.l.s4 1934713408
    %v662 = vunpack.c.0.s8 %v661
    %v663 = vlaneseq
    %v664 = vshrl.u32 %v663, 7
    %v665 = vsub.s32 %v662, %v664
    %v666 = vrot.slane %v658, %v665
    %v668 = vunpack.c.l.s4 1934713408
    %v669 = vunpack.c.0.s8 %v668
    %v670 = vlaneseq
    %v671 = vshrl.u32 %v670, 7
    %v672 = vsub.s32 %v669, %v671
    %v673 = vrot.slane %v659, %v672
    %v674 = vcombine.low %v641, %v657
    %v675 = vcombine.high %v641, %v657
    %v677 = vunpack.c.l.s4 1934713408
    %v678 = vunpack.c.0.s8 %v677
    %v679 = vlaneseq
    %v680 = vshrl.u32 %v679, 7
    %v681 = vsub.s32 %v678, %v680
    %v682 = vrot.slane %v674, %v681
    %v684 = vunpack.c.l.s4 1934713408
    %v685 = vunpack.c.0.s8 %v684
    %v686 = vlaneseq
    %v687 = vshrl.u32 %v686, 7
    %v688 = vsub.s32 %v685, %v687
    %v689 = vrot.slane %v675, %v688
    %v690 = vcombine.high %v666, 0.0
    %v691 = vcombine.high %v673, 0.0
    %v692 = vcombine.high %v682, 0.0
    %v693 = vcombine.high %v689, 0.0
    %v694 = vcombine.low %v414, %v416
    %v695 = vcombine.high %v414, %v416
    %v697 = vunpack.c.l.s4 1983009808
    %v698 = vunpack.c.0.s8 %v697
    %v699 = vlaneseq
    %v700 = vshrl.u32 %v699, 7
    %v701 = vsub.s32 %v698, %v700
    %v702 = vrot.slane %v694, %v701
    %v704 = vunpack.c.l.s4 1983009808
    %v705 = vunpack.c.0.s8 %v704
    %v706 = vlaneseq
    %v707 = vshrl.u32 %v706, 7
    %v708 = vsub.s32 %v705, %v707
    %v709 = vrot.slane %v695, %v708
    %v710 = vcombine.low %v415, %v417
    %v711 = vcombine.high %v415, %v417
    %v713 = vunpack.c.l.s4 1983009808
    %v714 = vunpack.c.0.s8 %v713
    %v715 = vlaneseq
    %v716 = vshrl.u32 %v715, 7
    %v717 = vsub.s32 %v714, %v716
    %v718 = vrot.slane %v710, %v717
    %v720 = vunpack.c.l.s4 1983009808
    %v721 = vunpack.c.0.s8 %v720
    %v722 = vlaneseq
    %v723 = vshrl.u32 %v722, 7
    %v724 = vsub.s32 %v721, %v723
    %v725 = vrot.slane %v711, %v724
    %v726 = vcombine.low %v418, %v420
    %v727 = vcombine.high %v418, %v420
    %v729 = vunpack.c.l.s4 1983009808
    %v730 = vunpack.c.0.s8 %v729
    %v731 = vlaneseq
    %v732 = vshrl.u32 %v731, 7
    %v733 = vsub.s32 %v730, %v732
    %v734 = vrot.slane %v726, %v733
    %v736 = vunpack.c.l.s4 1983009808
    %v737 = vunpack.c.0.s8 %v736
    %v738 = vlaneseq
    %v739 = vshrl.u32 %v738, 7
    %v740 = vsub.s32 %v737, %v739
    %v741 = vrot.slane %v727, %v740
    %v742 = vcombine.low %v419, %v421
    %v743 = vcombine.high %v419, %v421
    %v745 = vunpack.c.l.s4 1983009808
    %v746 = vunpack.c.0.s8 %v745
    %v747 = vlaneseq
    %v748 = vshrl.u32 %v747, 7
    %v749 = vsub.s32 %v746, %v748
    %v750 = vrot.slane %v742, %v749
    %v752 = vunpack.c.l.s4 1983009808
    %v753 = vunpack.c.0.s8 %v752
    %v754 = vlaneseq
    %v755 = vshrl.u32 %v754, 7
    %v756 = vsub.s32 %v753, %v755
    %v757 = vrot.slane %v743, %v756
    %v758 = vcombine.low %v702, %v718
    %v759 = vcombine.high %v702, %v718
    %v761 = vunpack.c.l.s4 1934713408
    %v762 = vunpack.c.0.s8 %v761
    %v763 = vlaneseq
    %v764 = vshrl.u32 %v763, 7
    %v765 = vsub.s32 %v762, %v764
    %v766 = vrot.slane %v758, %v765
    %v768 = vunpack.c.l.s4 1934713408
    %v769 = vunpack.c.0.s8 %v768
    %v770 = vlaneseq
    %v771 = vshrl.u32 %v770, 7
    %v772 = vsub.s32 %v769, %v771
    %v773 = vrot.slane %v759, %v772
    %v774 = vcombine.low %v709, %v725
    %v775 = vcombine.high %v709, %v725
    %v777 = vunpack.c.l.s4 1934713408
    %v778 = vunpack.c.0.s8 %v777
    %v779 = vlaneseq
    %v780 = vshrl.u32 %v779, 7
    %v781 = vsub.s32 %v778, %v780
    %v782 = vrot.slane %v774, %v781
    %v784 = vunpack.c.l.s4 1934713408
    %v785 = vunpack.c.0.s8 %v784
    %v786 = vlaneseq
    %v787 = vshrl.u32 %v786, 7
    %v788 = vsub.s32 %v785, %v787
    %v789 = vrot.slane %v775, %v788
    %v790 = vcombine.low %v734, %v750
    %v791 = vcombine.high %v734, %v750
    %v793 = vunpack.c.l.s4 1934713408
    %v794 = vunpack.c.0.s8 %v793
    %v795 = vlaneseq
    %v796 = vshrl.u32 %v795, 7
    %v797 = vsub.s32 %v794, %v796
    %v798 = vrot.slane %v790, %v797
    %v800 = vunpack.c.l.s4 1934713408
    %v801 = vunpack.c.0.s8 %v800
    %v802 = vlaneseq
    %v803 = vshrl.u32 %v802, 7
    %v804 = vsub.s32 %v801, %v803
    %v805 = vrot.slane %v791, %v804
    %v806 = vcombine.low %v741, %v757
    %v807 = vcombine.high %v741, %v757
    %v809 = vunpack.c.l.s4 1934713408
    %v810 = vunpack.c.0.s8 %v809
    %v811 = vlaneseq
    %v812 = vshrl.u32 %v811, 7
    %v813 = vsub.s32 %v810, %v812
    %v814 = vrot.slane %v806, %v813
    %v816 = vunpack.c.l.s4 1934713408
    %v817 = vunpack.c.0.s8 %v816
    %v818 = vlaneseq
    %v819 = vshrl.u32 %v818, 7
    %v820 = vsub.s32 %v817, %v819
    %v821 = vrot.slane %v807, %v820
    %v822 = vcombine.low %v766, %v798
    %v823 = vcombine.high %v766, %v798
    %v824 = vcombine.low %v773, %v805
    %v825 = vcombine.high %v773, %v805
    %v826 = vcombine.low %v782, %v814
    %v827 = vcombine.high %v782, %v814
    %v828 = vcombine.low %v789, %v821
    %v829 = vcombine.high %v789, %v821
    %v830 = vcombine.low %v462, %v469
    %v832 = vunpack.c.l.s4 1983009808
    %v833 = vunpack.c.0.s8 %v832
    %v834 = vlaneseq
    %v835 = vshrl.u32 %v834, 7
    %v836 = vsub.s32 %v833, %v835
    %v837 = vrot.slane %v830, %v836
    %v838 = vcombine.low %v486, %v487
    %v840 = vunpack.c.l.s4 1983009808
    %v841 = vunpack.c.0.s8 %v840
    %v842 = vlaneseq
    %v843 = vshrl.u32 %v842, 7
    %v844 = vsub.s32 %v841, %v843
    %v845 = vrot.slane %v838, %v844
    %v846 = vcombine.low %v478, %v485
    %v848 = vunpack.c.l.s4 1983009808
    %v849 = vunpack.c.0.s8 %v848
    %v850 = vlaneseq
    %v851 = vshrl.u32 %v850, 7
    %v852 = vsub.s32 %v849, %v851
    %v853 = vrot.slane %v846, %v852
    %v854 = vcombine.low %v488, %v489
    %v856 = vunpack.c.l.s4 1983009808
    %v857 = vunpack.c.0.s8 %v856
    %v858 = vlaneseq
    %v859 = vshrl.u32 %v858, 7
    %v860 = vsub.s32 %v857, %v859
    %v861 = vrot.slane %v854, %v860
    %v862 = vcombine.low %v837, %v845
    %v863 = vcombine.high %v837, %v845
    %v865 = vunpack.c.l.s4 1934713408
    %v866 = vunpack.c.0.s8 %v865
    %v867 = vlaneseq
    %v868 = vshrl.u32 %v867, 7
    %v869 = vsub.s32 %v866, %v868
    %v870 = vrot.slane %v862, %v869
    %v872 = vunpack.c.l.s4 1934713408
    %v873 = vunpack.c.0.s8 %v872
    %v874 = vlaneseq
    %v875 = vshrl.u32 %v874, 7
    %v876 = vsub.s32 %v873, %v875
    %v877 = vrot.slane %v863, %v876
    %v878 = vcombine.low %v853, %v861
    %v879 = vcombine.high %v853, %v861
    %v881 = vunpack.c.l.s4 1934713408
    %v882 = vunpack.c.0.s8 %v881
    %v883 = vlaneseq
    %v884 = vshrl.u32 %v883, 7
    %v885 = vsub.s32 %v882, %v884
    %v886 = vrot.slane %v878, %v885
    %v888 = vunpack.c.l.s4 1934713408
    %v889 = vunpack.c.0.s8 %v888
    %v890 = vlaneseq
    %v891 = vshrl.u32 %v890, 7
    %v892 = vsub.s32 %v889, %v891
    %v893 = vrot.slane %v879, %v892
    %v894 = vcombine.low %v870, %v886
    %v895 = vcombine.high %v870, %v886
    %v896 = vcombine.low %v877, %v893
    %v897 = vcombine.high %v877, %v893
    %v898 = vpack.c.bf16 %v822, %v822
    %v899 = vpack.c.bf16 %v823, %v823
    %v900 = vpack.c.bf16 %v824, %v824
    %v901 = vpack.c.bf16 %v825, %v825
    %v902 = vpack.c.bf16 %v826, %v826
    %v903 = vpack.c.bf16 %v827, %v827
    %v904 = vpack.c.bf16 %v828, %v828
    %v905 = vpack.c.bf16 %v829, %v829
    %v906 = vpack.c.bf16 %v894, %v894
    %v907 = vpack.c.bf16 %v895, %v895
    %v908 = vpack.c.bf16 %v896, %v896
    %v909 = vpack.c.bf16 %v897, %v897
    %vm910 = vcmask 64512
    %v912 = vsel %vm910, %v898, 0
    %v915 = vsel %vm910, %v902, 0
    %917 = vmatprep.subr.bf16.mxu0 0
    %918 = vmatpush1.bf16.xpose.msra.mxu0 0
    %919 = vmatprep.subr.bf16.mxu0 0
    %920 = vmatpush1.bf16.xpose.msra.mxu0 0
    %921 = vmatprep.subr.bf16.mxu0 0
    %922 = vmatpush1.bf16.xpose.msra.mxu0 0
    %923 = vmatprep.subr.bf16.mxu0 0
    %924 = vmatpush1.bf16.xpose.msra.mxu0 0
    %925 = vmatprep.subr.bf16.mxu0 0
    %926 = vmatpush1.bf16.xpose.msra.mxu0 0
    %927 = vmatprep.subr.bf16.mxu0 0
    %928 = vmatpush1.bf16.xpose.msra.mxu0 0
    %929 = vmatprep.subr.bf16.mxu0 0
    %930 = vmatpush1.bf16.xpose.msra.mxu0 0
    %931 = vmatprep.subr.bf16.mxu0 0
    %932 = vmatpush1.bf16.xpose.msra.mxu0 %v915
    %933 = vmatprep.subr.bf16.mxu0 0
    %934 = vmatpush2.bf16.xpose.msra.mxu0 0
    %935 = vmatprep.subr.bf16.mxu0 0
    %936 = vmatpush2.bf16.xpose.msra.mxu0 0
    %937 = vmatprep.subr.bf16.mxu0 0
    %938 = vmatpush2.bf16.xpose.msra.mxu0 0
    %939 = vmatprep.subr.bf16.mxu0 0
    %940 = vmatpush2.bf16.xpose.msra.mxu0 0
    %941 = vmatprep.subr.bf16.mxu0 0
    %942 = vmatpush2.bf16.xpose.msra.mxu0 0
    %943 = vmatprep.subr.bf16.mxu0 0
    %944 = vmatpush2.bf16.xpose.msra.mxu0 0
    %945 = vmatprep.subr.bf16.mxu0 0
    %946 = vmatpush2.bf16.xpose.msra.mxu0 0
    %947 = vmatprep.subr.bf16.mxu0 0
    %948 = vmatpush2.bf16.xpose.msra.mxu0 0
    %949 = vmatprep.mubr.bf16.mxu0 0
    %950 = vmatmul.mubr.bf16.gmra.mxu0 %v912
    %v951 = vpop.f32.mrf.mxu0
    %v952 = vadd.f32 0.0, %v951
    %v953 = vpop.f32.mrf.mxu0
    %v954 = vpop.f32.mrf.mxu0
    %v955 = vpop.f32.mrf.mxu0
    %956 = vdwg.mxu0
    %v958 = vsel %vm910, %v899, 0
    %v961 = vsel %vm910, %v903, 0
    %963 = vmatprep.subr.bf16.mxu0 0
    %964 = vmatpush1.bf16.xpose.msra.mxu0 0
    %965 = vmatprep.subr.bf16.mxu0 0
    %966 = vmatpush1.bf16.xpose.msra.mxu0 0
    %967 = vmatprep.subr.bf16.mxu0 0
    %968 = vmatpush1.bf16.xpose.msra.mxu0 0
    %969 = vmatprep.subr.bf16.mxu0 0
    %970 = vmatpush1.bf16.xpose.msra.mxu0 0
    %971 = vmatprep.subr.bf16.mxu0 0
    %972 = vmatpush1.bf16.xpose.msra.mxu0 0
    %973 = vmatprep.subr.bf16.mxu0 0
    %974 = vmatpush1.bf16.xpose.msra.mxu0 0
    %975 = vmatprep.subr.bf16.mxu0 0
    %976 = vmatpush1.bf16.xpose.msra.mxu0 0
    %977 = vmatprep.subr.bf16.mxu0 0
    %978 = vmatpush1.bf16.xpose.msra.mxu0 %v961
    %979 = vmatprep.subr.bf16.mxu0 0
    %980 = vmatpush2.bf16.xpose.msra.mxu0 0
    %981 = vmatprep.subr.bf16.mxu0 0
    %982 = vmatpush2.bf16.xpose.msra.mxu0 0
    %983 = vmatprep.subr.bf16.mxu0 0
    %984 = vmatpush2.bf16.xpose.msra.mxu0 0
    %985 = vmatprep.subr.bf16.mxu0 0
    %986 = vmatpush2.bf16.xpose.msra.mxu0 0
    %987 = vmatprep.subr.bf16.mxu0 0
    %988 = vmatpush2.bf16.xpose.msra.mxu0 0
    %989 = vmatprep.subr.bf16.mxu0 0
    %990 = vmatpush2.bf16.xpose.msra.mxu0 0
    %991 = vmatprep.subr.bf16.mxu0 0
    %992 = vmatpush2.bf16.xpose.msra.mxu0 0
    %993 = vmatprep.subr.bf16.mxu0 0
    %994 = vmatpush2.bf16.xpose.msra.mxu0 0
    %995 = vmatprep.mubr.bf16.mxu0 0
    %996 = vmatmul.mubr.bf16.gmra.mxu0 %v958
    %v997 = vpop.f32.mrf.mxu0
    %v998 = vadd.f32 0.0, %v997
    %v999 = vpop.f32.mrf.mxu0
    %v1000 = vpop.f32.mrf.mxu0
    %v1001 = vpop.f32.mrf.mxu0
    %1002 = vdwg.mxu0
    %v1004 = vsel %vm910, %v900, 0
    %v1007 = vsel %vm910, %v904, 0
    %1009 = vmatprep.subr.bf16.mxu0 0
    %1010 = vmatpush1.bf16.xpose.msra.mxu0 0
    %1011 = vmatprep.subr.bf16.mxu0 0
    %1012 = vmatpush1.bf16.xpose.msra.mxu0 0
    %1013 = vmatprep.subr.bf16.mxu0 0
    %1014 = vmatpush1.bf16.xpose.msra.mxu0 0
    %1015 = vmatprep.subr.bf16.mxu0 0
    %1016 = vmatpush1.bf16.xpose.msra.mxu0 0
    %1017 = vmatprep.subr.bf16.mxu0 0
    %1018 = vmatpush1.bf16.xpose.msra.mxu0 0
    %1019 = vmatprep.subr.bf16.mxu0 0
    %1020 = vmatpush1.bf16.xpose.msra.mxu0 0
    %1021 = vmatprep.subr.bf16.mxu0 0
    %1022 = vmatpush1.bf16.xpose.msra.mxu0 0
    %1023 = vmatprep.subr.bf16.mxu0 0
    %1024 = vmatpush1.bf16.xpose.msra.mxu0 %v1007
    %1025 = vmatprep.subr.bf16.mxu0 0
    %1026 = vmatpush2.bf16.xpose.msra.mxu0 0
    %1027 = vmatprep.subr.bf16.mxu0 0
    %1028 = vmatpush2.bf16.xpose.msra.mxu0 0
    %1029 = vmatprep.subr.bf16.mxu0 0
    %1030 = vmatpush2.bf16.xpose.msra.mxu0 0
    %1031 = vmatprep.subr.bf16.mxu0 0
    %1032 = vmatpush2.bf16.xpose.msra.mxu0 0
    %1033 = vmatprep.subr.bf16.mxu0 0
    %1034 = vmatpush2.bf16.xpose.msra.mxu0 0
    %1035 = vmatprep.subr.bf16.mxu0 0
    %1036 = vmatpush2.bf16.xpose.msra.mxu0 0
    %1037 = vmatprep.subr.bf16.mxu0 0
    %1038 = vmatpush2.bf16.xpose.msra.mxu0 0
    %1039 = vmatprep.subr.bf16.mxu0 0
    %1040 = vmatpush2.bf16.xpose.msra.mxu0 0
    %1041 = vmatprep.mubr.bf16.mxu0 0
    %1042 = vmatmul.mubr.bf16.gmra.mxu0 %v1004
    %v1043 = vpop.f32.mrf.mxu0
    %v1044 = vadd.f32 0.0, %v1043
    %v1045 = vpop.f32.mrf.mxu0
    %v1046 = vpop.f32.mrf.mxu0
    %v1047 = vpop.f32.mrf.mxu0
    %1048 = vdwg.mxu0
    %v1050 = vsel %vm910, %v901, 0
    %v1053 = vsel %vm910, %v905, 0
    %1055 = vmatprep.subr.bf16.mxu0 0
    %1056 = vmatpush1.bf16.xpose.msra.mxu0 0
    %1057 = vmatprep.subr.bf16.mxu0 0
    %1058 = vmatpush1.bf16.xpose.msra.mxu0 0
    %1059 = vmatprep.subr.bf16.mxu0 0
    %1060 = vmatpush1.bf16.xpose.msra.mxu0 0
    %1061 = vmatprep.subr.bf16.mxu0 0
    %1062 = vmatpush1.bf16.xpose.msra.mxu0 0
    %1063 = vmatprep.subr.bf16.mxu0 0
    %1064 = vmatpush1.bf16.xpose.msra.mxu0 0
    %1065 = vmatprep.subr.bf16.mxu0 0
    %1066 = vmatpush1.bf16.xpose.msra.mxu0 0
    %1067 = vmatprep.subr.bf16.mxu0 0
    %1068 = vmatpush1.bf16.xpose.msra.mxu0 0
    %1069 = vmatprep.subr.bf16.mxu0 0
    %1070 = vmatpush1.bf16.xpose.msra.mxu0 %v1053
    %1071 = vmatprep.subr.bf16.mxu0 0
    %1072 = vmatpush2.bf16.xpose.msra.mxu0 0
    %1073 = vmatprep.subr.bf16.mxu0 0
    %1074 = vmatpush2.bf16.xpose.msra.mxu0 0
    %1075 = vmatprep.subr.bf16.mxu0 0
    %1076 = vmatpush2.bf16.xpose.msra.mxu0 0
    %1077 = vmatprep.subr.bf16.mxu0 0
    %1078 = vmatpush2.bf16.xpose.msra.mxu0 0
    %1079 = vmatprep.subr.bf16.mxu0 0
    %1080 = vmatpush2.bf16.xpose.msra.mxu0 0
    %1081 = vmatprep.subr.bf16.mxu0 0
    %1082 = vmatpush2.bf16.xpose.msra.mxu0 0
    %1083 = vmatprep.subr.bf16.mxu0 0
    %1084 = vmatpush2.bf16.xpose.msra.mxu0 0
    %1085 = vmatprep.subr.bf16.mxu0 0
    %1086 = vmatpush2.bf16.xpose.msra.mxu0 0
    %1087 = vmatprep.mubr.bf16.mxu0 0
    %1088 = vmatmul.mubr.bf16.gmra.mxu0 %v1050
    %v1089 = vpop.f32.mrf.mxu0
    %v1090 = vadd.f32 0.0, %v1089
    %v1091 = vpop.f32.mrf.mxu0
    %v1092 = vpop.f32.mrf.mxu0
    %v1093 = vpop.f32.mrf.mxu0
    %1094 = vdwg.mxu0
    %v1095 = vsel %vm910, %v952, -inf
    %1096 = vmax.xlane.f32.xlu0 %v1095
    %v1097 = vpop.xlane.xlu0 %1096
    %v1098 = vsel %vm910, %v998, -inf
    %1099 = vmax.xlane.f32.xlu0 %v1098
    %v1100 = vpop.xlane.xlu0 %1099
    %v1101 = vsel %vm910, %v1044, -inf
    %1102 = vmax.xlane.f32.xlu0 %v1101
    %v1103 = vpop.xlane.xlu0 %1102
    %v1104 = vsel %vm910, %v1090, -inf
    %1105 = vmax.xlane.f32.xlu0 %v1104
    %v1106 = vpop.xlane.xlu0 %1105
    %v1107 = vsub.f32 %v952, %v1097
    %v1108 = vsub.f32 %v998, %v1100
    %v1109 = vsub.f32 %v1044, %v1103
    %v1110 = vsub.f32 %v1090, %v1106
    %v1111 = vmul.f32 %v1107, 1.442695
    %v1112 = vpow.pop %v1111
    %v1113 = vmul.f32 %v1108, 1.442695
    %v1114 = vpow.pop %v1113
    %v1115 = vmul.f32 %v1109, 1.442695
    %v1116 = vpow.pop %v1115
    %v1117 = vmul.f32 %v1110, 1.442695
    %v1118 = vpow.pop %v1117
    %v1119 = vsel %vm910, %v1112, 0.0
    %1120 = vadd.xlane.f32.xlu0 %v1119
    %v1121 = vpop.xlane.xlu0 %1120
    %v1122 = vsel %vm910, %v1114, 0.0
    %1123 = vadd.xlane.f32.xlu0 %v1122
    %v1124 = vpop.xlane.xlu0 %1123
    %v1125 = vsel %vm910, %v1116, 0.0
    %1126 = vadd.xlane.f32.xlu0 %v1125
    %v1127 = vpop.xlane.xlu0 %1126
    %v1128 = vsel %vm910, %v1118, 0.0
    %1129 = vadd.xlane.f32.xlu0 %v1128
    %v1130 = vpop.xlane.xlu0 %1129
    %v1131 = vrcp.pop %v1121
    %v1132 = vrcp.pop %v1124
    %v1133 = vrcp.pop %v1127
    %v1134 = vrcp.pop %v1130
    %v1135 = vmul.f32 %v1112, %v1131
    %v1136 = vmul.f32 %v1114, %v1132
    %v1137 = vmul.f32 %v1116, %v1133
    %v1138 = vmul.f32 %v1118, %v1134
    %v1139 = vpack.c.bf16 %v1135, %v1135
    %v1140 = vpack.c.bf16 %v1136, %v1136
    %v1141 = vpack.c.bf16 %v1137, %v1137
    %v1142 = vpack.c.bf16 %v1138, %v1138
    %v1144 = vsel %vm910, %v1139, 0
    %vm1146 = vcmask 1043456
    %v1148 = vsel %vm1146, %v906, 0
    %1150 = vmatprep.subr.bf16.mxu0 0
    %1151 = vmatpush1.bf16.msra.mxu0 0
    %1152 = vmatprep.subr.bf16.mxu0 0
    %1153 = vmatpush1.bf16.msra.mxu0 0
    %1154 = vmatprep.subr.bf16.mxu0 0
    %1155 = vmatpush1.bf16.msra.mxu0 0
    %1156 = vmatprep.subr.bf16.mxu0 0
    %1157 = vmatpush1.bf16.msra.mxu0 0
    %1158 = vmatprep.subr.bf16.mxu0 0
    %1159 = vmatpush1.bf16.msra.mxu0 0
    %1160 = vmatprep.subr.bf16.mxu0 0
    %1161 = vmatpush1.bf16.msra.mxu0 0
    %1162 = vmatprep.subr.bf16.mxu0 0
    %1163 = vmatpush1.bf16.msra.mxu0 0
    %1164 = vmatprep.subr.bf16.mxu0 0
    %1165 = vmatpush1.bf16.msra.mxu0 %v1148
    %1166 = vmatprep.subr.bf16.mxu0 0
    %1167 = vmatpush2.bf16.msra.mxu0 0
    %1168 = vmatprep.subr.bf16.mxu0 0
    %1169 = vmatpush2.bf16.msra.mxu0 0
    %1170 = vmatprep.subr.bf16.mxu0 0
    %1171 = vmatpush2.bf16.msra.mxu0 0
    %1172 = vmatprep.subr.bf16.mxu0 0
    %1173 = vmatpush2.bf16.msra.mxu0 0
    %1174 = vmatprep.subr.bf16.mxu0 0
    %1175 = vmatpush2.bf16.msra.mxu0 0
    %1176 = vmatprep.subr.bf16.mxu0 0
    %1177 = vmatpush2.bf16.msra.mxu0 0
    %1178 = vmatprep.subr.bf16.mxu0 0
    %1179 = vmatpush2.bf16.msra.mxu0 0
    %1180 = vmatprep.subr.bf16.mxu0 0
    %1181 = vmatpush2.bf16.msra.mxu0 0
    %1182 = vmatprep.mubr.bf16.mxu0 0
    %1183 = vmatmul.mubr.bf16.gmra.mxu0 %v1144
    %v1184 = vpop.f32.mrf.mxu0
    %v1185 = vadd.f32 0.0, %v1184
    %v1186 = vpop.f32.mrf.mxu0
    %v1187 = vpop.f32.mrf.mxu0
    %v1188 = vpop.f32.mrf.mxu0
    %1189 = vdwg.mxu0
    %v1191 = vsel %vm910, %v1140, 0
    %v1194 = vsel %vm1146, %v907, 0
    %1196 = vmatprep.subr.bf16.mxu0 0
    %1197 = vmatpush1.bf16.msra.mxu0 0
    %1198 = vmatprep.subr.bf16.mxu0 0
    %1199 = vmatpush1.bf16.msra.mxu0 0
    %1200 = vmatprep.subr.bf16.mxu0 0
    %1201 = vmatpush1.bf16.msra.mxu0 0
    %1202 = vmatprep.subr.bf16.mxu0 0
    %1203 = vmatpush1.bf16.msra.mxu0 0
    %1204 = vmatprep.subr.bf16.mxu0 0
    %1205 = vmatpush1.bf16.msra.mxu0 0
    %1206 = vmatprep.subr.bf16.mxu0 0
    %1207 = vmatpush1.bf16.msra.mxu0 0
    %1208 = vmatprep.subr.bf16.mxu0 0
    %1209 = vmatpush1.bf16.msra.mxu0 0
    %1210 = vmatprep.subr.bf16.mxu0 0
    %1211 = vmatpush1.bf16.msra.mxu0 %v1194
    %1212 = vmatprep.subr.bf16.mxu0 0
    %1213 = vmatpush2.bf16.msra.mxu0 0
    %1214 = vmatprep.subr.bf16.mxu0 0
    %1215 = vmatpush2.bf16.msra.mxu0 0
    %1216 = vmatprep.subr.bf16.mxu0 0
    %1217 = vmatpush2.bf16.msra.mxu0 0
    %1218 = vmatprep.subr.bf16.mxu0 0
    %1219 = vmatpush2.bf16.msra.mxu0 0
    %1220 = vmatprep.subr.bf16.mxu0 0
    %1221 = vmatpush2.bf16.msra.mxu0 0
    %1222 = vmatprep.subr.bf16.mxu0 0
    %1223 = vmatpush2.bf16.msra.mxu0 0
    %1224 = vmatprep.subr.bf16.mxu0 0
    %1225 = vmatpush2.bf16.msra.mxu0 0
    %1226 = vmatprep.subr.bf16.mxu0 0
    %1227 = vmatpush2.bf16.msra.mxu0 0
    %1228 = vmatprep.mubr.bf16.mxu0 0
    %1229 = vmatmul.mubr.bf16.gmra.mxu0 %v1191
    %v1230 = vpop.f32.mrf.mxu0
    %v1231 = vadd.f32 0.0, %v1230
    %v1232 = vpop.f32.mrf.mxu0
    %v1233 = vpop.f32.mrf.mxu0
    %v1234 = vpop.f32.mrf.mxu0
    %1235 = vdwg.mxu0
    %v1237 = vsel %vm910, %v1141, 0
    %v1240 = vsel %vm1146, %v908, 0
    %1242 = vmatprep.subr.bf16.mxu0 0
    %1243 = vmatpush1.bf16.msra.mxu0 0
    %1244 = vmatprep.subr.bf16.mxu0 0
    %1245 = vmatpush1.bf16.msra.mxu0 0
    %1246 = vmatprep.subr.bf16.mxu0 0
    %1247 = vmatpush1.bf16.msra.mxu0 0
    %1248 = vmatprep.subr.bf16.mxu0 0
    %1249 = vmatpush1.bf16.msra.mxu0 0
    %1250 = vmatprep.subr.bf16.mxu0 0
    %1251 = vmatpush1.bf16.msra.mxu0 0
    %1252 = vmatprep.subr.bf16.mxu0 0
    %1253 = vmatpush1.bf16.msra.mxu0 0
    %1254 = vmatprep.subr.bf16.mxu0 0
    %1255 = vmatpush1.bf16.msra.mxu0 0
    %1256 = vmatprep.subr.bf16.mxu0 0
    %1257 = vmatpush1.bf16.msra.mxu0 %v1240
    %1258 = vmatprep.subr.bf16.mxu0 0
    %1259 = vmatpush2.bf16.msra.mxu0 0
    %1260 = vmatprep.subr.bf16.mxu0 0
    %1261 = vmatpush2.bf16.msra.mxu0 0
    %1262 = vmatprep.subr.bf16.mxu0 0
    %1263 = vmatpush2.bf16.msra.mxu0 0
    %1264 = vmatprep.subr.bf16.mxu0 0
    %1265 = vmatpush2.bf16.msra.mxu0 0
    %1266 = vmatprep.subr.bf16.mxu0 0
    %1267 = vmatpush2.bf16.msra.mxu0 0
    %1268 = vmatprep.subr.bf16.mxu0 0
    %1269 = vmatpush2.bf16.msra.mxu0 0
    %1270 = vmatprep.subr.bf16.mxu0 0
    %1271 = vmatpush2.bf16.msra.mxu0 0
    %1272 = vmatprep.subr.bf16.mxu0 0
    %1273 = vmatpush2.bf16.msra.mxu0 0
    %1274 = vmatprep.mubr.bf16.mxu0 0
    %1275 = vmatmul.mubr.bf16.gmra.mxu0 %v1237
    %v1276 = vpop.f32.mrf.mxu0
    %v1277 = vadd.f32 0.0, %v1276
    %v1278 = vpop.f32.mrf.mxu0
    %v1279 = vpop.f32.mrf.mxu0
    %v1280 = vpop.f32.mrf.mxu0
    %1281 = vdwg.mxu0
    %v1283 = vsel %vm910, %v1142, 0
    %v1286 = vsel %vm1146, %v909, 0
    %1288 = vmatprep.subr.bf16.mxu0 0
    %1289 = vmatpush1.bf16.msra.mxu0 0
    %1290 = vmatprep.subr.bf16.mxu0 0
    %1291 = vmatpush1.bf16.msra.mxu0 0
    %1292 = vmatprep.subr.bf16.mxu0 0
    %1293 = vmatpush1.bf16.msra.mxu0 0
    %1294 = vmatprep.subr.bf16.mxu0 0
    %1295 = vmatpush1.bf16.msra.mxu0 0
    %1296 = vmatprep.subr.bf16.mxu0 0
    %1297 = vmatpush1.bf16.msra.mxu0 0
    %1298 = vmatprep.subr.bf16.mxu0 0
    %1299 = vmatpush1.bf16.msra.mxu0 0
    %1300 = vmatprep.subr.bf16.mxu0 0
    %1301 = vmatpush1.bf16.msra.mxu0 0
    %1302 = vmatprep.subr.bf16.mxu0 0
    %1303 = vmatpush1.bf16.msra.mxu0 %v1286
    %1304 = vmatprep.subr.bf16.mxu0 0
    %1305 = vmatpush2.bf16.msra.mxu0 0
    %1306 = vmatprep.subr.bf16.mxu0 0
    %1307 = vmatpush2.bf16.msra.mxu0 0
    %1308 = vmatprep.subr.bf16.mxu0 0
    %1309 = vmatpush2.bf16.msra.mxu0 0
    %1310 = vmatprep.subr.bf16.mxu0 0
    %1311 = vmatpush2.bf16.msra.mxu0 0
    %1312 = vmatprep.subr.bf16.mxu0 0
    %1313 = vmatpush2.bf16.msra.mxu0 0
    %1314 = vmatprep.subr.bf16.mxu0 0
    %1315 = vmatpush2.bf16.msra.mxu0 0
    %1316 = vmatprep.subr.bf16.mxu0 0
    %1317 = vmatpush2.bf16.msra.mxu0 0
    %1318 = vmatprep.subr.bf16.mxu0 0
    %1319 = vmatpush2.bf16.msra.mxu0 0
    %1320 = vmatprep.mubr.bf16.mxu0 0
    %1321 = vmatmul.mubr.bf16.gmra.mxu0 %v1283
    %v1322 = vpop.f32.mrf.mxu0
    %v1323 = vadd.f32 0.0, %v1322
    %v1324 = vpop.f32.mrf.mxu0
    %v1325 = vpop.f32.mrf.mxu0
    %v1326 = vpop.f32.mrf.mxu0
    %1327 = vdwg.mxu0
    %v1328 = vcombine.low %v1185, %v1277
    %v1329 = vcombine.high %v1185, %v1277
    %v1331 = vunpack.c.l.s4 1983009808
    %v1332 = vunpack.c.0.s8 %v1331
    %v1333 = vlaneseq
    %v1334 = vshrl.u32 %v1333, 7
    %v1335 = vsub.s32 %v1332, %v1334
    %v1336 = vrot.slane %v1328, %v1335
    %v1338 = vunpack.c.l.s4 1983009808
    %v1339 = vunpack.c.0.s8 %v1338
    %v1340 = vlaneseq
    %v1341 = vshrl.u32 %v1340, 7
    %v1342 = vsub.s32 %v1339, %v1341
    %v1343 = vrot.slane %v1329, %v1342
    %v1344 = vcombine.low %v1231, %v1323
    %v1345 = vcombine.high %v1231, %v1323
    %v1347 = vunpack.c.l.s4 1983009808
    %v1348 = vunpack.c.0.s8 %v1347
    %v1349 = vlaneseq
    %v1350 = vshrl.u32 %v1349, 7
    %v1351 = vsub.s32 %v1348, %v1350
    %v1352 = vrot.slane %v1344, %v1351
    %v1354 = vunpack.c.l.s4 1983009808
    %v1355 = vunpack.c.0.s8 %v1354
    %v1356 = vlaneseq
    %v1357 = vshrl.u32 %v1356, 7
    %v1358 = vsub.s32 %v1355, %v1357
    %v1359 = vrot.slane %v1345, %v1358
    %v1360 = vcombine.low %v1336, %v1352
    %v1361 = vcombine.high %v1336, %v1352
    %v1363 = vunpack.c.l.s4 1934713408
    %v1364 = vunpack.c.0.s8 %v1363
    %v1365 = vlaneseq
    %v1366 = vshrl.u32 %v1365, 7
    %v1367 = vsub.s32 %v1364, %v1366
    %v1368 = vrot.slane %v1360, %v1367
    %v1370 = vunpack.c.l.s4 1934713408
    %v1371 = vunpack.c.0.s8 %v1370
    %v1372 = vlaneseq
    %v1373 = vshrl.u32 %v1372, 7
    %v1374 = vsub.s32 %v1371, %v1373
    %v1375 = vrot.slane %v1361, %v1374
    %v1376 = vcombine.low %v1343, %v1359
    %v1377 = vcombine.high %v1343, %v1359
    %v1379 = vunpack.c.l.s4 1934713408
    %v1380 = vunpack.c.0.s8 %v1379
    %v1381 = vlaneseq
    %v1382 = vshrl.u32 %v1381, 7
    %v1383 = vsub.s32 %v1380, %v1382
    %v1384 = vrot.slane %v1376, %v1383
    %v1386 = vunpack.c.l.s4 1934713408
    %v1387 = vunpack.c.0.s8 %v1386
    %v1388 = vlaneseq
    %v1389 = vshrl.u32 %v1388, 7
    %v1390 = vsub.s32 %v1387, %v1389
    %v1391 = vrot.slane %v1377, %v1390
    %v1392 = vcombine.high %v1368, 0.0
    %v1393 = vcombine.high %v1375, 0.0
    %v1394 = vcombine.high %v1384, 0.0
    %v1395 = vcombine.high %v1391, 0.0
    %v1396 = vcombine.low %v1368, %v1375
    %v1398 = vunpack.c.l.s4 1983009808
    %v1399 = vunpack.c.0.s8 %v1398
    %v1400 = vlaneseq
    %v1401 = vshrl.u32 %v1400, 7
    %v1402 = vsub.s32 %v1399, %v1401
    %v1403 = vrot.slane %v1396, %v1402
    %v1404 = vcombine.low %v1392, %v1393
    %v1406 = vunpack.c.l.s4 1983009808
    %v1407 = vunpack.c.0.s8 %v1406
    %v1408 = vlaneseq
    %v1409 = vshrl.u32 %v1408, 7
    %v1410 = vsub.s32 %v1407, %v1409
    %v1411 = vrot.slane %v1404, %v1410
    %v1412 = vcombine.low %v1384, %v1391
    %v1414 = vunpack.c.l.s4 1983009808
    %v1415 = vunpack.c.0.s8 %v1414
    %v1416 = vlaneseq
    %v1417 = vshrl.u32 %v1416, 7
    %v1418 = vsub.s32 %v1415, %v1417
    %v1419 = vrot.slane %v1412, %v1418
    %v1420 = vcombine.low %v1394, %v1395
    %v1422 = vunpack.c.l.s4 1983009808
    %v1423 = vunpack.c.0.s8 %v1422
    %v1424 = vlaneseq
    %v1425 = vshrl.u32 %v1424, 7
    %v1426 = vsub.s32 %v1423, %v1425
    %v1427 = vrot.slane %v1420, %v1426
    %v1428 = vcombine.low %v1403, %v1411
    %v1429 = vcombine.high %v1403, %v1411
    %v1431 = vunpack.c.l.s4 1934713408
    %v1432 = vunpack.c.0.s8 %v1431
    %v1433 = vlaneseq
    %v1434 = vshrl.u32 %v1433, 7
    %v1435 = vsub.s32 %v1432, %v1434
    %v1436 = vrot.slane %v1428, %v1435
    %v1438 = vunpack.c.l.s4 1934713408
    %v1439 = vunpack.c.0.s8 %v1438
    %v1440 = vlaneseq
    %v1441 = vshrl.u32 %v1440, 7
    %v1442 = vsub.s32 %v1439, %v1441
    %v1443 = vrot.slane %v1429, %v1442
    %v1444 = vcombine.low %v1419, %v1427
    %v1445 = vcombine.high %v1419, %v1427
    %v1447 = vunpack.c.l.s4 1934713408
    %v1448 = vunpack.c.0.s8 %v1447
    %v1449 = vlaneseq
    %v1450 = vshrl.u32 %v1449, 7
    %v1451 = vsub.s32 %v1448, %v1450
    %v1452 = vrot.slane %v1444, %v1451
    %v1454 = vunpack.c.l.s4 1934713408
    %v1455 = vunpack.c.0.s8 %v1454
    %v1456 = vlaneseq
    %v1457 = vshrl.u32 %v1456, 7
    %v1458 = vsub.s32 %v1455, %v1457
    %v1459 = vrot.slane %v1445, %v1458
    %v1460 = vcombine.low %v1436, %v1452
    %v1461 = vcombine.high %v1436, %v1452
    %v1462 = vcombine.low %v1443, %v1459
    %v1463 = vcombine.high %v1443, %v1459
    %1465 = vrot.lane.b32.xlu0 %v1461, 8
    %v1466 = vpop.permute.xlu0 %1465
    %1469 = vrot.lane.b32.xlu0 %v1462, 16
    %v1470 = vpop.permute.xlu0 %1469
    %1473 = vrot.lane.b32.xlu0 %v1463, 24
    %v1474 = vpop.permute.xlu0 %1473
    %v1476 = vsel %vm910, %v1460, %v1466
    %vm1477 = vcmask 130048
    %v1478 = vsel %vm1477, %v1476, %v1470
    %vm1479 = vcmask 195584
    %v1480 = vsel %vm1479, %v1478, %v1474
    %v1481 = vcombine.low %v618, %v620
    %v1482 = vcombine.high %v618, %v620
    %v1484 = vunpack.c.l.s4 1983009808
    %v1485 = vunpack.c.0.s8 %v1484
    %v1486 = vlaneseq
    %v1487 = vshrl.u32 %v1486, 7
    %v1488 = vsub.s32 %v1485, %v1487
    %v1489 = vrot.slane %v1481, %v1488
    %v1491 = vunpack.c.l.s4 1983009808
    %v1492 = vunpack.c.0.s8 %v1491
    %v1493 = vlaneseq
    %v1494 = vshrl.u32 %v1493, 7
    %v1495 = vsub.s32 %v1492, %v1494
    %v1496 = vrot.slane %v1482, %v1495
    %v1497 = vcombine.low %v619, %v621
    %v1498 = vcombine.high %v619, %v621
    %v1500 = vunpack.c.l.s4 1983009808
    %v1501 = vunpack.c.0.s8 %v1500
    %v1502 = vlaneseq
    %v1503 = vshrl.u32 %v1502, 7
    %v1504 = vsub.s32 %v1501, %v1503
    %v1505 = vrot.slane %v1497, %v1504
    %v1507 = vunpack.c.l.s4 1983009808
    %v1508 = vunpack.c.0.s8 %v1507
    %v1509 = vlaneseq
    %v1510 = vshrl.u32 %v1509, 7
    %v1511 = vsub.s32 %v1508, %v1510
    %v1512 = vrot.slane %v1498, %v1511
    %v1513 = vcombine.low %v622, %v624
    %v1514 = vcombine.high %v622, %v624
    %v1516 = vunpack.c.l.s4 1983009808
    %v1517 = vunpack.c.0.s8 %v1516
    %v1518 = vlaneseq
    %v1519 = vshrl.u32 %v1518, 7
    %v1520 = vsub.s32 %v1517, %v1519
    %v1521 = vrot.slane %v1513, %v1520
    %v1523 = vunpack.c.l.s4 1983009808
    %v1524 = vunpack.c.0.s8 %v1523
    %v1525 = vlaneseq
    %v1526 = vshrl.u32 %v1525, 7
    %v1527 = vsub.s32 %v1524, %v1526
    %v1528 = vrot.slane %v1514, %v1527
    %v1529 = vcombine.low %v623, %v625
    %v1530 = vcombine.high %v623, %v625
    %v1532 = vunpack.c.l.s4 1983009808
    %v1533 = vunpack.c.0.s8 %v1532
    %v1534 = vlaneseq
    %v1535 = vshrl.u32 %v1534, 7
    %v1536 = vsub.s32 %v1533, %v1535
    %v1537 = vrot.slane %v1529, %v1536
    %v1539 = vunpack.c.l.s4 1983009808
    %v1540 = vunpack.c.0.s8 %v1539
    %v1541 = vlaneseq
    %v1542 = vshrl.u32 %v1541, 7
    %v1543 = vsub.s32 %v1540, %v1542
    %v1544 = vrot.slane %v1530, %v1543
    %v1545 = vcombine.low %v1489, %v1505
    %v1546 = vcombine.high %v1489, %v1505
    %v1548 = vunpack.c.l.s4 1934713408
    %v1549 = vunpack.c.0.s8 %v1548
    %v1550 = vlaneseq
    %v1551 = vshrl.u32 %v1550, 7
    %v1552 = vsub.s32 %v1549, %v1551
    %v1553 = vrot.slane %v1545, %v1552
    %v1555 = vunpack.c.l.s4 1934713408
    %v1556 = vunpack.c.0.s8 %v1555
    %v1557 = vlaneseq
    %v1558 = vshrl.u32 %v1557, 7
    %v1559 = vsub.s32 %v1556, %v1558
    %v1560 = vrot.slane %v1546, %v1559
    %v1561 = vcombine.low %v1496, %v1512
    %v1562 = vcombine.high %v1496, %v1512
    %v1564 = vunpack.c.l.s4 1934713408
    %v1565 = vunpack.c.0.s8 %v1564
    %v1566 = vlaneseq
    %v1567 = vshrl.u32 %v1566, 7
    %v1568 = vsub.s32 %v1565, %v1567
    %v1569 = vrot.slane %v1561, %v1568
    %v1571 = vunpack.c.l.s4 1934713408
    %v1572 = vunpack.c.0.s8 %v1571
    %v1573 = vlaneseq
    %v1574 = vshrl.u32 %v1573, 7
    %v1575 = vsub.s32 %v1572, %v1574
    %v1576 = vrot.slane %v1562, %v1575
    %v1577 = vcombine.low %v1521, %v1537
    %v1578 = vcombine.high %v1521, %v1537
    %v1580 = vunpack.c.l.s4 1934713408
    %v1581 = vunpack.c.0.s8 %v1580
    %v1582 = vlaneseq
    %v1583 = vshrl.u32 %v1582, 7
    %v1584 = vsub.s32 %v1581, %v1583
    %v1585 = vrot.slane %v1577, %v1584
    %v1587 = vunpack.c.l.s4 1934713408
    %v1588 = vunpack.c.0.s8 %v1587
    %v1589 = vlaneseq
    %v1590 = vshrl.u32 %v1589, 7
    %v1591 = vsub.s32 %v1588, %v1590
    %v1592 = vrot.slane %v1578, %v1591
    %v1593 = vcombine.low %v1528, %v1544
    %v1594 = vcombine.high %v1528, %v1544
    %v1596 = vunpack.c.l.s4 1934713408
    %v1597 = vunpack.c.0.s8 %v1596
    %v1598 = vlaneseq
    %v1599 = vshrl.u32 %v1598, 7
    %v1600 = vsub.s32 %v1597, %v1599
    %v1601 = vrot.slane %v1593, %v1600
    %v1603 = vunpack.c.l.s4 1934713408
    %v1604 = vunpack.c.0.s8 %v1603
    %v1605 = vlaneseq
    %v1606 = vshrl.u32 %v1605, 7
    %v1607 = vsub.s32 %v1604, %v1606
    %v1608 = vrot.slane %v1594, %v1607
    %v1609 = vcombine.low %v1553, %v1585
    %v1610 = vcombine.high %v1553, %v1585
    %v1611 = vcombine.low %v1560, %v1592
    %v1612 = vcombine.high %v1560, %v1592
    %v1613 = vcombine.low %v1569, %v1601
    %v1614 = vcombine.high %v1569, %v1601
    %v1615 = vcombine.low %v1576, %v1608
    %v1616 = vcombine.high %v1576, %v1608
    %v1617 = vcombine.low %v666, %v673
    %v1619 = vunpack.c.l.s4 1983009808
    %v1620 = vunpack.c.0.s8 %v1619
    %v1621 = vlaneseq
    %v1622 = vshrl.u32 %v1621, 7
    %v1623 = vsub.s32 %v1620, %v1622
    %v1624 = vrot.slane %v1617, %v1623
    %v1625 = vcombine.low %v690, %v691
    %v1627 = vunpack.c.l.s4 1983009808
    %v1628 = vunpack.c.0.s8 %v1627
    %v1629 = vlaneseq
    %v1630 = vshrl.u32 %v1629, 7
    %v1631 = vsub.s32 %v1628, %v1630
    %v1632 = vrot.slane %v1625, %v1631
    %v1633 = vcombine.low %v682, %v689
    %v1635 = vunpack.c.l.s4 1983009808
    %v1636 = vunpack.c.0.s8 %v1635
    %v1637 = vlaneseq
    %v1638 = vshrl.u32 %v1637, 7
    %v1639 = vsub.s32 %v1636, %v1638
    %v1640 = vrot.slane %v1633, %v1639
    %v1641 = vcombine.low %v692, %v693
    %v1643 = vunpack.c.l.s4 1983009808
    %v1644 = vunpack.c.0.s8 %v1643
    %v1645 = vlaneseq
    %v1646 = vshrl.u32 %v1645, 7
    %v1647 = vsub.s32 %v1644, %v1646
    %v1648 = vrot.slane %v1641, %v1647
    %v1649 = vcombine.low %v1624, %v1632
    %v1650 = vcombine.high %v1624, %v1632
    %v1652 = vunpack.c.l.s4 1934713408
    %v1653 = vunpack.c.0.s8 %v1652
    %v1654 = vlaneseq
    %v1655 = vshrl.u32 %v1654, 7
    %v1656 = vsub.s32 %v1653, %v1655
    %v1657 = vrot.slane %v1649, %v1656
    %v1659 = vunpack.c.l.s4 1934713408
    %v1660 = vunpack.c.0.s8 %v1659
    %v1661 = vlaneseq
    %v1662 = vshrl.u32 %v1661, 7
    %v1663 = vsub.s32 %v1660, %v1662
    %v1664 = vrot.slane %v1650, %v1663
    %v1665 = vcombine.low %v1640, %v1648
    %v1666 = vcombine.high %v1640, %v1648
    %v1668 = vunpack.c.l.s4 1934713408
    %v1669 = vunpack.c.0.s8 %v1668
    %v1670 = vlaneseq
    %v1671 = vshrl.u32 %v1670, 7
    %v1672 = vsub.s32 %v1669, %v1671
    %v1673 = vrot.slane %v1665, %v1672
    %v1675 = vunpack.c.l.s4 1934713408
    %v1676 = vunpack.c.0.s8 %v1675
    %v1677 = vlaneseq
    %v1678 = vshrl.u32 %v1677, 7
    %v1679 = vsub.s32 %v1676, %v1678
    %v1680 = vrot.slane %v1666, %v1679
    %v1681 = vcombine.low %v1657, %v1673
    %v1682 = vcombine.high %v1657, %v1673
    %v1683 = vcombine.low %v1664, %v1680
    %v1684 = vcombine.high %v1664, %v1680
    %v1685 = vpack.c.bf16 %v1609, %v1609
    %v1686 = vpack.c.bf16 %v1610, %v1610
    %v1687 = vpack.c.bf16 %v1611, %v1611
    %v1688 = vpack.c.bf16 %v1612, %v1612
    %v1689 = vpack.c.bf16 %v1613, %v1613
    %v1690 = vpack.c.bf16 %v1614, %v1614
    %v1691 = vpack.c.bf16 %v1615, %v1615
    %v1692 = vpack.c.bf16 %v1616, %v1616
    %v1693 = vpack.c.bf16 %v1681, %v1681
    %v1694 = vpack.c.bf16 %v1682, %v1682
    %v1695 = vpack.c.bf16 %v1683, %v1683
    %v1696 = vpack.c.bf16 %v1684, %v1684
    %v1698 = vsel %vm910, %v1685, 0
    %v1701 = vsel %vm910, %v1689, 0
    %1703 = vmatprep.subr.bf16.mxu0 0
    %1704 = vmatpush1.bf16.xpose.msra.mxu0 0
    %1705 = vmatprep.subr.bf16.mxu0 0
    %1706 = vmatpush1.bf16.xpose.msra.mxu0 0
    %1707 = vmatprep.subr.bf16.mxu0 0
    %1708 = vmatpush1.bf16.xpose.msra.mxu0 0
    %1709 = vmatprep.subr.bf16.mxu0 0
    %1710 = vmatpush1.bf16.xpose.msra.mxu0 0
    %1711 = vmatprep.subr.bf16.mxu0 0
    %1712 = vmatpush1.bf16.xpose.msra.mxu0 0
    %1713 = vmatprep.subr.bf16.mxu0 0
    %1714 = vmatpush1.bf16.xpose.msra.mxu0 0
    %1715 = vmatprep.subr.bf16.mxu0 0
    %1716 = vmatpush1.bf16.xpose.msra.mxu0 0
    %1717 = vmatprep.subr.bf16.mxu0 0
    %1718 = vmatpush1.bf16.xpose.msra.mxu0 %v1701
    %1719 = vmatprep.subr.bf16.mxu0 0
    %1720 = vmatpush2.bf16.xpose.msra.mxu0 0
    %1721 = vmatprep.subr.bf16.mxu0 0
    %1722 = vmatpush2.bf16.xpose.msra.mxu0 0
    %1723 = vmatprep.subr.bf16.mxu0 0
    %1724 = vmatpush2.bf16.xpose.msra.mxu0 0
    %1725 = vmatprep.subr.bf16.mxu0 0
    %1726 = vmatpush2.bf16.xpose.msra.mxu0 0
    %1727 = vmatprep.subr.bf16.mxu0 0
    %1728 = vmatpush2.bf16.xpose.msra.mxu0 0
    %1729 = vmatprep.subr.bf16.mxu0 0
    %1730 = vmatpush2.bf16.xpose.msra.mxu0 0
    %1731 = vmatprep.subr.bf16.mxu0 0
    %1732 = vmatpush2.bf16.xpose.msra.mxu0 0
    %1733 = vmatprep.subr.bf16.mxu0 0
    %1734 = vmatpush2.bf16.xpose.msra.mxu0 0
    %1735 = vmatprep.mubr.bf16.mxu0 0
    %1736 = vmatmul.mubr.bf16.gmra.mxu0 %v1698
    %v1737 = vpop.f32.mrf.mxu0
    %v1738 = vadd.f32 0.0, %v1737
    %v1739 = vpop.f32.mrf.mxu0
    %v1740 = vpop.f32.mrf.mxu0
    %v1741 = vpop.f32.mrf.mxu0
    %1742 = vdwg.mxu0
    %v1744 = vsel %vm910, %v1686, 0
    %v1747 = vsel %vm910, %v1690, 0
    %1749 = vmatprep.subr.bf16.mxu0 0
    %1750 = vmatpush1.bf16.xpose.msra.mxu0 0
    %1751 = vmatprep.subr.bf16.mxu0 0
    %1752 = vmatpush1.bf16.xpose.msra.mxu0 0
    %1753 = vmatprep.subr.bf16.mxu0 0
    %1754 = vmatpush1.bf16.xpose.msra.mxu0 0
    %1755 = vmatprep.subr.bf16.mxu0 0
    %1756 = vmatpush1.bf16.xpose.msra.mxu0 0
    %1757 = vmatprep.subr.bf16.mxu0 0
    %1758 = vmatpush1.bf16.xpose.msra.mxu0 0
    %1759 = vmatprep.subr.bf16.mxu0 0
    %1760 = vmatpush1.bf16.xpose.msra.mxu0 0
    %1761 = vmatprep.subr.bf16.mxu0 0
    %1762 = vmatpush1.bf16.xpose.msra.mxu0 0
    %1763 = vmatprep.subr.bf16.mxu0 0
    %1764 = vmatpush1.bf16.xpose.msra.mxu0 %v1747
    %1765 = vmatprep.subr.bf16.mxu0 0
    %1766 = vmatpush2.bf16.xpose.msra.mxu0 0
    %1767 = vmatprep.subr.bf16.mxu0 0
    %1768 = vmatpush2.bf16.xpose.msra.mxu0 0
    %1769 = vmatprep.subr.bf16.mxu0 0
    %1770 = vmatpush2.bf16.xpose.msra.mxu0 0
    %1771 = vmatprep.subr.bf16.mxu0 0
    %1772 = vmatpush2.bf16.xpose.msra.mxu0 0
    %1773 = vmatprep.subr.bf16.mxu0 0
    %1774 = vmatpush2.bf16.xpose.msra.mxu0 0
    %1775 = vmatprep.subr.bf16.mxu0 0
    %1776 = vmatpush2.bf16.xpose.msra.mxu0 0
    %1777 = vmatprep.subr.bf16.mxu0 0
    %1778 = vmatpush2.bf16.xpose.msra.mxu0 0
    %1779 = vmatprep.subr.bf16.mxu0 0
    %1780 = vmatpush2.bf16.xpose.msra.mxu0 0
    %1781 = vmatprep.mubr.bf16.mxu0 0
    %1782 = vmatmul.mubr.bf16.gmra.mxu0 %v1744
    %v1783 = vpop.f32.mrf.mxu0
    %v1784 = vadd.f32 0.0, %v1783
    %v1785 = vpop.f32.mrf.mxu0
    %v1786 = vpop.f32.mrf.mxu0
    %v1787 = vpop.f32.mrf.mxu0
    %1788 = vdwg.mxu0
    %v1790 = vsel %vm910, %v1687, 0
    %v1793 = vsel %vm910, %v1691, 0
    %1795 = vmatprep.subr.bf16.mxu0 0
    %1796 = vmatpush1.bf16.xpose.msra.mxu0 0
    %1797 = vmatprep.subr.bf16.mxu0 0
    %1798 = vmatpush1.bf16.xpose.msra.mxu0 0
    %1799 = vmatprep.subr.bf16.mxu0 0
    %1800 = vmatpush1.bf16.xpose.msra.mxu0 0
    %1801 = vmatprep.subr.bf16.mxu0 0
    %1802 = vmatpush1.bf16.xpose.msra.mxu0 0
    %1803 = vmatprep.subr.bf16.mxu0 0
    %1804 = vmatpush1.bf16.xpose.msra.mxu0 0
    %1805 = vmatprep.subr.bf16.mxu0 0
    %1806 = vmatpush1.bf16.xpose.msra.mxu0 0
    %1807 = vmatprep.subr.bf16.mxu0 0
    %1808 = vmatpush1.bf16.xpose.msra.mxu0 0
    %1809 = vmatprep.subr.bf16.mxu0 0
    %1810 = vmatpush1.bf16.xpose.msra.mxu0 %v1793
    %1811 = vmatprep.subr.bf16.mxu0 0
    %1812 = vmatpush2.bf16.xpose.msra.mxu0 0
    %1813 = vmatprep.subr.bf16.mxu0 0
    %1814 = vmatpush2.bf16.xpose.msra.mxu0 0
    %1815 = vmatprep.subr.bf16.mxu0 0
    %1816 = vmatpush2.bf16.xpose.msra.mxu0 0
    %1817 = vmatprep.subr.bf16.mxu0 0
    %1818 = vmatpush2.bf16.xpose.msra.mxu0 0
    %1819 = vmatprep.subr.bf16.mxu0 0
    %1820 = vmatpush2.bf16.xpose.msra.mxu0 0
    %1821 = vmatprep.subr.bf16.mxu0 0
    %1822 = vmatpush2.bf16.xpose.msra.mxu0 0
    %1823 = vmatprep.subr.bf16.mxu0 0
    %1824 = vmatpush2.bf16.xpose.msra.mxu0 0
    %1825 = vmatprep.subr.bf16.mxu0 0
    %1826 = vmatpush2.bf16.xpose.msra.mxu0 0
    %1827 = vmatprep.mubr.bf16.mxu0 0
    %1828 = vmatmul.mubr.bf16.gmra.mxu0 %v1790
    %v1829 = vpop.f32.mrf.mxu0
    %v1830 = vadd.f32 0.0, %v1829
    %v1831 = vpop.f32.mrf.mxu0
    %v1832 = vpop.f32.mrf.mxu0
    %v1833 = vpop.f32.mrf.mxu0
    %1834 = vdwg.mxu0
    %v1836 = vsel %vm910, %v1688, 0
    %v1839 = vsel %vm910, %v1692, 0
    %1841 = vmatprep.subr.bf16.mxu0 0
    %1842 = vmatpush1.bf16.xpose.msra.mxu0 0
    %1843 = vmatprep.subr.bf16.mxu0 0
    %1844 = vmatpush1.bf16.xpose.msra.mxu0 0
    %1845 = vmatprep.subr.bf16.mxu0 0
    %1846 = vmatpush1.bf16.xpose.msra.mxu0 0
    %1847 = vmatprep.subr.bf16.mxu0 0
    %1848 = vmatpush1.bf16.xpose.msra.mxu0 0
    %1849 = vmatprep.subr.bf16.mxu0 0
    %1850 = vmatpush1.bf16.xpose.msra.mxu0 0
    %1851 = vmatprep.subr.bf16.mxu0 0
    %1852 = vmatpush1.bf16.xpose.msra.mxu0 0
    %1853 = vmatprep.subr.bf16.mxu0 0
    %1854 = vmatpush1.bf16.xpose.msra.mxu0 0
    %1855 = vmatprep.subr.bf16.mxu0 0
    %1856 = vmatpush1.bf16.xpose.msra.mxu0 %v1839
    %1857 = vmatprep.subr.bf16.mxu0 0
    %1858 = vmatpush2.bf16.xpose.msra.mxu0 0
    %1859 = vmatprep.subr.bf16.mxu0 0
    %1860 = vmatpush2.bf16.xpose.msra.mxu0 0
    %1861 = vmatprep.subr.bf16.mxu0 0
    %1862 = vmatpush2.bf16.xpose.msra.mxu0 0
    %1863 = vmatprep.subr.bf16.mxu0 0
    %1864 = vmatpush2.bf16.xpose.msra.mxu0 0
    %1865 = vmatprep.subr.bf16.mxu0 0
    %1866 = vmatpush2.bf16.xpose.msra.mxu0 0
    %1867 = vmatprep.subr.bf16.mxu0 0
    %1868 = vmatpush2.bf16.xpose.msra.mxu0 0
    %1869 = vmatprep.subr.bf16.mxu0 0
    %1870 = vmatpush2.bf16.xpose.msra.mxu0 0
    %1871 = vmatprep.subr.bf16.mxu0 0
    %1872 = vmatpush2.bf16.xpose.msra.mxu0 0
    %1873 = vmatprep.mubr.bf16.mxu0 0
    %1874 = vmatmul.mubr.bf16.gmra.mxu0 %v1836
    %v1875 = vpop.f32.mrf.mxu0
    %v1876 = vadd.f32 0.0, %v1875
    %v1877 = vpop.f32.mrf.mxu0
    %v1878 = vpop.f32.mrf.mxu0
    %v1879 = vpop.f32.mrf.mxu0
    %1880 = vdwg.mxu0
    %v1881 = vsel %vm910, %v1738, -inf
    %1882 = vmax.xlane.f32.xlu0 %v1881
    %v1883 = vpop.xlane.xlu0 %1882
    %v1884 = vsel %vm910, %v1784, -inf
    %1885 = vmax.xlane.f32.xlu0 %v1884
    %v1886 = vpop.xlane.xlu0 %1885
    %v1887 = vsel %vm910, %v1830, -inf
    %1888 = vmax.xlane.f32.xlu0 %v1887
    %v1889 = vpop.xlane.xlu0 %1888
    %v1890 = vsel %vm910, %v1876, -inf
    %1891 = vmax.xlane.f32.xlu0 %v1890
    %v1892 = vpop.xlane.xlu0 %1891
    %v1893 = vsub.f32 %v1738, %v1883
    %v1894 = vsub.f32 %v1784, %v1886
    %v1895 = vsub.f32 %v1830, %v1889
    %v1896 = vsub.f32 %v1876, %v1892
    %v1897 = vmul.f32 %v1893, 1.442695
    %v1898 = vpow.pop %v1897
    %v1899 = vmul.f32 %v1894, 1.442695
    %v1900 = vpow.pop %v1899
    %v1901 = vmul.f32 %v1895, 1.442695
    %v1902 = vpow.pop %v1901
    %v1903 = vmul.f32 %v1896, 1.442695
    %v1904 = vpow.pop %v1903
    %v1905 = vsel %vm910, %v1898, 0.0
    %1906 = vadd.xlane.f32.xlu0 %v1905
    %v1907 = vpop.xlane.xlu0 %1906
    %v1908 = vsel %vm910, %v1900, 0.0
    %1909 = vadd.xlane.f32.xlu0 %v1908
    %v1910 = vpop.xlane.xlu0 %1909
    %v1911 = vsel %vm910, %v1902, 0.0
    %1912 = vadd.xlane.f32.xlu0 %v1911
    %v1913 = vpop.xlane.xlu0 %1912
    %v1914 = vsel %vm910, %v1904, 0.0
    %1915 = vadd.xlane.f32.xlu0 %v1914
    %v1916 = vpop.xlane.xlu0 %1915
    %v1917 = vrcp.pop %v1907
    %v1918 = vrcp.pop %v1910
    %v1919 = vrcp.pop %v1913
    %v1920 = vrcp.pop %v1916
    %v1921 = vmul.f32 %v1898, %v1917
    %v1922 = vmul.f32 %v1900, %v1918
    %v1923 = vmul.f32 %v1902, %v1919
    %v1924 = vmul.f32 %v1904, %v1920
    %v1925 = vpack.c.bf16 %v1921, %v1921
    %v1926 = vpack.c.bf16 %v1922, %v1922
    %v1927 = vpack.c.bf16 %v1923, %v1923
    %v1928 = vpack.c.bf16 %v1924, %v1924
    %v1930 = vsel %vm910, %v1925, 0
    %v1933 = vsel %vm1146, %v1693, 0
    %1935 = vmatprep.subr.bf16.mxu0 0
    %1936 = vmatpush1.bf16.msra.mxu0 0
    %1937 = vmatprep.subr.bf16.mxu0 0
    %1938 = vmatpush1.bf16.msra.mxu0 0
    %1939 = vmatprep.subr.bf16.mxu0 0
    %1940 = vmatpush1.bf16.msra.mxu0 0
    %1941 = vmatprep.subr.bf16.mxu0 0
    %1942 = vmatpush1.bf16.msra.mxu0 0
    %1943 = vmatprep.subr.bf16.mxu0 0
    %1944 = vmatpush1.bf16.msra.mxu0 0
    %1945 = vmatprep.subr.bf16.mxu0 0
    %1946 = vmatpush1.bf16.msra.mxu0 0
    %1947 = vmatprep.subr.bf16.mxu0 0
    %1948 = vmatpush1.bf16.msra.mxu0 0
    %1949 = vmatprep.subr.bf16.mxu0 0
    %1950 = vmatpush1.bf16.msra.mxu0 %v1933
    %1951 = vmatprep.subr.bf16.mxu0 0
    %1952 = vmatpush2.bf16.msra.mxu0 0
    %1953 = vmatprep.subr.bf16.mxu0 0
    %1954 = vmatpush2.bf16.msra.mxu0 0
    %1955 = vmatprep.subr.bf16.mxu0 0
    %1956 = vmatpush2.bf16.msra.mxu0 0
    %1957 = vmatprep.subr.bf16.mxu0 0
    %1958 = vmatpush2.bf16.msra.mxu0 0
    %1959 = vmatprep.subr.bf16.mxu0 0
    %1960 = vmatpush2.bf16.msra.mxu0 0
    %1961 = vmatprep.subr.bf16.mxu0 0
    %1962 = vmatpush2.bf16.msra.mxu0 0
    %1963 = vmatprep.subr.bf16.mxu0 0
    %1964 = vmatpush2.bf16.msra.mxu0 0
    %1965 = vmatprep.subr.bf16.mxu0 0
    %1966 = vmatpush2.bf16.msra.mxu0 0
    %1967 = vmatprep.mubr.bf16.mxu0 0
    %1968 = vmatmul.mubr.bf16.gmra.mxu0 %v1930
    %v1969 = vpop.f32.mrf.mxu0
    %v1970 = vadd.f32 0.0, %v1969
    %v1971 = vpop.f32.mrf.mxu0
    %v1972 = vpop.f32.mrf.mxu0
    %v1973 = vpop.f32.mrf.mxu0
    %1974 = vdwg.mxu0
    %v1976 = vsel %vm910, %v1926, 0
    %v1979 = vsel %vm1146, %v1694, 0
    %1981 = vmatprep.subr.bf16.mxu0 0
    %1982 = vmatpush1.bf16.msra.mxu0 0
    %1983 = vmatprep.subr.bf16.mxu0 0
    %1984 = vmatpush1.bf16.msra.mxu0 0
    %1985 = vmatprep.subr.bf16.mxu0 0
    %1986 = vmatpush1.bf16.msra.mxu0 0
    %1987 = vmatprep.subr.bf16.mxu0 0
    %1988 = vmatpush1.bf16.msra.mxu0 0
    %1989 = vmatprep.subr.bf16.mxu0 0
    %1990 = vmatpush1.bf16.msra.mxu0 0
    %1991 = vmatprep.subr.bf16.mxu0 0
    %1992 = vmatpush1.bf16.msra.mxu0 0
    %1993 = vmatprep.subr.bf16.mxu0 0
    %1994 = vmatpush1.bf16.msra.mxu0 0
    %1995 = vmatprep.subr.bf16.mxu0 0
    %1996 = vmatpush1.bf16.msra.mxu0 %v1979
    %1997 = vmatprep.subr.bf16.mxu0 0
    %1998 = vmatpush2.bf16.msra.mxu0 0
    %1999 = vmatprep.subr.bf16.mxu0 0
    %2000 = vmatpush2.bf16.msra.mxu0 0
    %2001 = vmatprep.subr.bf16.mxu0 0
    %2002 = vmatpush2.bf16.msra.mxu0 0
    %2003 = vmatprep.subr.bf16.mxu0 0
    %2004 = vmatpush2.bf16.msra.mxu0 0
    %2005 = vmatprep.subr.bf16.mxu0 0
    %2006 = vmatpush2.bf16.msra.mxu0 0
    %2007 = vmatprep.subr.bf16.mxu0 0
    %2008 = vmatpush2.bf16.msra.mxu0 0
    %2009 = vmatprep.subr.bf16.mxu0 0
    %2010 = vmatpush2.bf16.msra.mxu0 0
    %2011 = vmatprep.subr.bf16.mxu0 0
    %2012 = vmatpush2.bf16.msra.mxu0 0
    %2013 = vmatprep.mubr.bf16.mxu0 0
    %2014 = vmatmul.mubr.bf16.gmra.mxu0 %v1976
    %v2015 = vpop.f32.mrf.mxu0
    %v2016 = vadd.f32 0.0, %v2015
    %v2017 = vpop.f32.mrf.mxu0
    %v2018 = vpop.f32.mrf.mxu0
    %v2019 = vpop.f32.mrf.mxu0
    %2020 = vdwg.mxu0
    %v2022 = vsel %vm910, %v1927, 0
    %v2025 = vsel %vm1146, %v1695, 0
    %2027 = vmatprep.subr.bf16.mxu0 0
    %2028 = vmatpush1.bf16.msra.mxu0 0
    %2029 = vmatprep.subr.bf16.mxu0 0
    %2030 = vmatpush1.bf16.msra.mxu0 0
    %2031 = vmatprep.subr.bf16.mxu0 0
    %2032 = vmatpush1.bf16.msra.mxu0 0
    %2033 = vmatprep.subr.bf16.mxu0 0
    %2034 = vmatpush1.bf16.msra.mxu0 0
    %2035 = vmatprep.subr.bf16.mxu0 0
    %2036 = vmatpush1.bf16.msra.mxu0 0
    %2037 = vmatprep.subr.bf16.mxu0 0
    %2038 = vmatpush1.bf16.msra.mxu0 0
    %2039 = vmatprep.subr.bf16.mxu0 0
    %2040 = vmatpush1.bf16.msra.mxu0 0
    %2041 = vmatprep.subr.bf16.mxu0 0
    %2042 = vmatpush1.bf16.msra.mxu0 %v2025
    %2043 = vmatprep.subr.bf16.mxu0 0
    %2044 = vmatpush2.bf16.msra.mxu0 0
    %2045 = vmatprep.subr.bf16.mxu0 0
    %2046 = vmatpush2.bf16.msra.mxu0 0
    %2047 = vmatprep.subr.bf16.mxu0 0
    %2048 = vmatpush2.bf16.msra.mxu0 0
    %2049 = vmatprep.subr.bf16.mxu0 0
    %2050 = vmatpush2.bf16.msra.mxu0 0
    %2051 = vmatprep.subr.bf16.mxu0 0
    %2052 = vmatpush2.bf16.msra.mxu0 0
    %2053 = vmatprep.subr.bf16.mxu0 0
    %2054 = vmatpush2.bf16.msra.mxu0 0
    %2055 = vmatprep.subr.bf16.mxu0 0
    %2056 = vmatpush2.bf16.msra.mxu0 0
    %2057 = vmatprep.subr.bf16.mxu0 0
    %2058 = vmatpush2.bf16.msra.mxu0 0
    %2059 = vmatprep.mubr.bf16.mxu0 0
    %2060 = vmatmul.mubr.bf16.gmra.mxu0 %v2022
    %v2061 = vpop.f32.mrf.mxu0
    %v2062 = vadd.f32 0.0, %v2061
    %v2063 = vpop.f32.mrf.mxu0
    %v2064 = vpop.f32.mrf.mxu0
    %v2065 = vpop.f32.mrf.mxu0
    %2066 = vdwg.mxu0
    %v2068 = vsel %vm910, %v1928, 0
    %v2071 = vsel %vm1146, %v1696, 0
    %2073 = vmatprep.subr.bf16.mxu0 0
    %2074 = vmatpush1.bf16.msra.mxu0 0
    %2075 = vmatprep.subr.bf16.mxu0 0
    %2076 = vmatpush1.bf16.msra.mxu0 0
    %2077 = vmatprep.subr.bf16.mxu0 0
    %2078 = vmatpush1.bf16.msra.mxu0 0
    %2079 = vmatprep.subr.bf16.mxu0 0
    %2080 = vmatpush1.bf16.msra.mxu0 0
    %2081 = vmatprep.subr.bf16.mxu0 0
    %2082 = vmatpush1.bf16.msra.mxu0 0
    %2083 = vmatprep.subr.bf16.mxu0 0
    %2084 = vmatpush1.bf16.msra.mxu0 0
    %2085 = vmatprep.subr.bf16.mxu0 0
    %2086 = vmatpush1.bf16.msra.mxu0 0
    %2087 = vmatprep.subr.bf16.mxu0 0
    %2088 = vmatpush1.bf16.msra.mxu0 %v2071
    %2089 = vmatprep.subr.bf16.mxu0 0
    %2090 = vmatpush2.bf16.msra.mxu0 0
    %2091 = vmatprep.subr.bf16.mxu0 0
    %2092 = vmatpush2.bf16.msra.mxu0 0
    %2093 = vmatprep.subr.bf16.mxu0 0
    %2094 = vmatpush2.bf16.msra.mxu0 0
    %2095 = vmatprep.subr.bf16.mxu0 0
    %2096 = vmatpush2.bf16.msra.mxu0 0
    %2097 = vmatprep.subr.bf16.mxu0 0
    %2098 = vmatpush2.bf16.msra.mxu0 0
    %2099 = vmatprep.subr.bf16.mxu0 0
    %2100 = vmatpush2.bf16.msra.mxu0 0
    %2101 = vmatprep.subr.bf16.mxu0 0
    %2102 = vmatpush2.bf16.msra.mxu0 0
    %2103 = vmatprep.subr.bf16.mxu0 0
    %2104 = vmatpush2.bf16.msra.mxu0 0
    %2105 = vmatprep.mubr.bf16.mxu0 0
    %2106 = vmatmul.mubr.bf16.gmra.mxu0 %v2068
    %v2107 = vpop.f32.mrf.mxu0
    %v2108 = vadd.f32 0.0, %v2107
    %v2109 = vpop.f32.mrf.mxu0
    %v2110 = vpop.f32.mrf.mxu0
    %v2111 = vpop.f32.mrf.mxu0
    %2112 = vdwg.mxu0
    %v2113 = vcombine.low %v1970, %v2062
    %v2114 = vcombine.high %v1970, %v2062
    %v2116 = vunpack.c.l.s4 1983009808
    %v2117 = vunpack.c.0.s8 %v2116
    %v2118 = vlaneseq
    %v2119 = vshrl.u32 %v2118, 7
    %v2120 = vsub.s32 %v2117, %v2119
    %v2121 = vrot.slane %v2113, %v2120
    %v2123 = vunpack.c.l.s4 1983009808
    %v2124 = vunpack.c.0.s8 %v2123
    %v2125 = vlaneseq
    %v2126 = vshrl.u32 %v2125, 7
    %v2127 = vsub.s32 %v2124, %v2126
    %v2128 = vrot.slane %v2114, %v2127
    %v2129 = vcombine.low %v2016, %v2108
    %v2130 = vcombine.high %v2016, %v2108
    %v2132 = vunpack.c.l.s4 1983009808
    %v2133 = vunpack.c.0.s8 %v2132
    %v2134 = vlaneseq
    %v2135 = vshrl.u32 %v2134, 7
    %v2136 = vsub.s32 %v2133, %v2135
    %v2137 = vrot.slane %v2129, %v2136
    %v2139 = vunpack.c.l.s4 1983009808
    %v2140 = vunpack.c.0.s8 %v2139
    %v2141 = vlaneseq
    %v2142 = vshrl.u32 %v2141, 7
    %v2143 = vsub.s32 %v2140, %v2142
    %v2144 = vrot.slane %v2130, %v2143
    %v2145 = vcombine.low %v2121, %v2137
    %v2146 = vcombine.high %v2121, %v2137
    %v2148 = vunpack.c.l.s4 1934713408
    %v2149 = vunpack.c.0.s8 %v2148
    %v2150 = vlaneseq
    %v2151 = vshrl.u32 %v2150, 7
    %v2152 = vsub.s32 %v2149, %v2151
    %v2153 = vrot.slane %v2145, %v2152
    %v2155 = vunpack.c.l.s4 1934713408
    %v2156 = vunpack.c.0.s8 %v2155
    %v2157 = vlaneseq
    %v2158 = vshrl.u32 %v2157, 7
    %v2159 = vsub.s32 %v2156, %v2158
    %v2160 = vrot.slane %v2146, %v2159
    %v2161 = vcombine.low %v2128, %v2144
    %v2162 = vcombine.high %v2128, %v2144
    %v2164 = vunpack.c.l.s4 1934713408
    %v2165 = vunpack.c.0.s8 %v2164
    %v2166 = vlaneseq
    %v2167 = vshrl.u32 %v2166, 7
    %v2168 = vsub.s32 %v2165, %v2167
    %v2169 = vrot.slane %v2161, %v2168
    %v2171 = vunpack.c.l.s4 1934713408
    %v2172 = vunpack.c.0.s8 %v2171
    %v2173 = vlaneseq
    %v2174 = vshrl.u32 %v2173, 7
    %v2175 = vsub.s32 %v2172, %v2174
    %v2176 = vrot.slane %v2162, %v2175
    %v2177 = vcombine.high %v2153, 0.0
    %v2178 = vcombine.high %v2160, 0.0
    %v2179 = vcombine.high %v2169, 0.0
    %v2180 = vcombine.high %v2176, 0.0
    %v2181 = vcombine.low %v2153, %v2160
    %v2183 = vunpack.c.l.s4 1983009808
    %v2184 = vunpack.c.0.s8 %v2183
    %v2185 = vlaneseq
    %v2186 = vshrl.u32 %v2185, 7
    %v2187 = vsub.s32 %v2184, %v2186
    %v2188 = vrot.slane %v2181, %v2187
    %v2189 = vcombine.low %v2177, %v2178
    %v2191 = vunpack.c.l.s4 1983009808
    %v2192 = vunpack.c.0.s8 %v2191
    %v2193 = vlaneseq
    %v2194 = vshrl.u32 %v2193, 7
    %v2195 = vsub.s32 %v2192, %v2194
    %v2196 = vrot.slane %v2189, %v2195
    %v2197 = vcombine.low %v2169, %v2176
    %v2199 = vunpack.c.l.s4 1983009808
    %v2200 = vunpack.c.0.s8 %v2199
    %v2201 = vlaneseq
    %v2202 = vshrl.u32 %v2201, 7
    %v2203 = vsub.s32 %v2200, %v2202
    %v2204 = vrot.slane %v2197, %v2203
    %v2205 = vcombine.low %v2179, %v2180
    %v2207 = vunpack.c.l.s4 1983009808
    %v2208 = vunpack.c.0.s8 %v2207
    %v2209 = vlaneseq
    %v2210 = vshrl.u32 %v2209, 7
    %v2211 = vsub.s32 %v2208, %v2210
    %v2212 = vrot.slane %v2205, %v2211
    %v2213 = vcombine.low %v2188, %v2196
    %v2214 = vcombine.high %v2188, %v2196
    %v2216 = vunpack.c.l.s4 1934713408
    %v2217 = vunpack.c.0.s8 %v2216
    %v2218 = vlaneseq
    %v2219 = vshrl.u32 %v2218, 7
    %v2220 = vsub.s32 %v2217, %v2219
    %v2221 = vrot.slane %v2213, %v2220
    %v2223 = vunpack.c.l.s4 1934713408
    %v2224 = vunpack.c.0.s8 %v2223
    %v2225 = vlaneseq
    %v2226 = vshrl.u32 %v2225, 7
    %v2227 = vsub.s32 %v2224, %v2226
    %v2228 = vrot.slane %v2214, %v2227
    %v2229 = vcombine.low %v2204, %v2212
    %v2230 = vcombine.high %v2204, %v2212
    %v2232 = vunpack.c.l.s4 1934713408
    %v2233 = vunpack.c.0.s8 %v2232
    %v2234 = vlaneseq
    %v2235 = vshrl.u32 %v2234, 7
    %v2236 = vsub.s32 %v2233, %v2235
    %v2237 = vrot.slane %v2229, %v2236
    %v2239 = vunpack.c.l.s4 1934713408
    %v2240 = vunpack.c.0.s8 %v2239
    %v2241 = vlaneseq
    %v2242 = vshrl.u32 %v2241, 7
    %v2243 = vsub.s32 %v2240, %v2242
    %v2244 = vrot.slane %v2230, %v2243
    %v2245 = vcombine.low %v2221, %v2237
    %v2246 = vcombine.high %v2221, %v2237
    %v2247 = vcombine.low %v2228, %v2244
    %v2248 = vcombine.high %v2228, %v2244
    %2250 = vrot.lane.b32.xlu0 %v2246, 8
    %v2251 = vpop.permute.xlu0 %2250
    %2254 = vrot.lane.b32.xlu0 %v2247, 16
    %v2255 = vpop.permute.xlu0 %2254
    %2258 = vrot.lane.b32.xlu0 %v2248, 24
    %v2259 = vpop.permute.xlu0 %2258
    %v2261 = vsel %vm910, %v2245, %v2251
    %v2262 = vsel %vm1477, %v2261, %v2255
    %v2263 = vsel %vm1479, %v2262, %v2259
    %v2264 = vpack.c.bf16 %v2263, %v1480
    %v2265 = vld [vmem:[%s5] sm:$0xf]
    %v2266 = vld [vmem:[%s5 + $0x4] sm:$0xf]
    %v2267 = vld [vmem:[%s5 + $0x8] sm:$0xf]
    %v2268 = vld [vmem:[%s5 + $0xc] sm:$0xf]
    %v2269 = vld [vmem:[%s6] sm:$0x1]
    %v2271 = vlaneseq
    %v2272 = vshrl.u32 %v2271, 7
    %v2273 = vsub.s32 0, %v2272
    %v2274 = vrot.slane %v2269, %v2273
    %v2280 = vunpack.c.l.b16 %v2265
    %v2281 = vunpack.c.l.b16 %v2266
    %v2282 = vunpack.c.l.b16 %v2267
    %v2283 = vunpack.c.l.b16 %v2268
    %v2284 = vpack.c.b16 %v2281, %v2280
    %v2285 = vpack.c.b16 %v2283, %v2282
    %v2289 = vsel %vm104, %v2264, 0
    %2291 = vmatprep.subr.bf16.mxu0 0
    %2292 = vmatpush1.bf16.msra.mxu0 0
    %2293 = vmatprep.subr.bf16.mxu0 0
    %2294 = vmatpush1.bf16.msra.mxu0 0
    %2295 = vmatprep.subr.bf16.mxu0 0
    %2296 = vmatpush1.bf16.msra.mxu0 0
    %2297 = vmatprep.subr.bf16.mxu0 0
    %2298 = vmatpush1.bf16.msra.mxu0 0
    %2299 = vmatprep.subr.bf16.mxu0 0
    %2300 = vmatpush1.bf16.msra.mxu0 0
    %2301 = vmatprep.subr.bf16.mxu0 0
    %2302 = vmatpush1.bf16.msra.mxu0 0
    %2303 = vmatprep.subr.bf16.mxu0 0
    %2304 = vmatpush1.bf16.msra.mxu0 %v2285
    %2305 = vmatprep.subr.bf16.mxu0 0
    %2306 = vmatpush1.bf16.msra.mxu0 %v2284
    %2307 = vmatprep.subr.bf16.mxu0 0
    %2308 = vmatpush2.bf16.msra.mxu0 0
    %2309 = vmatprep.subr.bf16.mxu0 0
    %2310 = vmatpush2.bf16.msra.mxu0 0
    %2311 = vmatprep.subr.bf16.mxu0 0
    %2312 = vmatpush2.bf16.msra.mxu0 0
    %2313 = vmatprep.subr.bf16.mxu0 0
    %2314 = vmatpush2.bf16.msra.mxu0 0
    %2315 = vmatprep.subr.bf16.mxu0 0
    %2316 = vmatpush2.bf16.msra.mxu0 0
    %2317 = vmatprep.subr.bf16.mxu0 0
    %2318 = vmatpush2.bf16.msra.mxu0 0
    %2319 = vmatprep.subr.bf16.mxu0 0
    %2320 = vmatpush2.bf16.msra.mxu0 0
    %2321 = vmatprep.subr.bf16.mxu0 0
    %2322 = vmatpush2.bf16.msra.mxu0 0
    %2323 = vmatprep.mubr.bf16.mxu0 0
    %2324 = vmatmul.mubr.bf16.gmra.mxu0 %v2289
    %v2325 = vpop.f32.mrf.mxu0
    %v2326 = vadd.f32 %v2274, %v2325
    %v2327 = vpop.f32.mrf.mxu0
    %v2328 = vpop.f32.mrf.mxu0
    %v2329 = vadd.f32 %v2274, %v2328
    %v2330 = vpop.f32.mrf.mxu0
    %2331 = vdwg.mxu0
    %v2332 = vadd.f32 %v102, %v2326
    %v2333 = vadd.f32 %v103, %v2329
    %v2334 = vsel %vm104, %v2332, 0.0
    %2335 = vadd.xlane.f32.xlu0 %v2334
    %v2336 = vpop.xlane.xlu0 %2335
    %v2337 = vsel %vm104, %v2333, 0.0
    %2338 = vadd.xlane.f32.xlu0 %v2337
    %v2339 = vpop.xlane.xlu0 %2338
    %v2340 = vmul.f32 %v2336, %v111
    %v2341 = vmul.f32 %v2339, %v111
    %v2342 = vsub.f32 %v2332, %v2340
    %v2343 = vsub.f32 %v2333, %v2341
    %v2344 = vmul.f32 %v2342, %v2342
    %v2345 = vmul.f32 %v2343, %v2343
    %v2346 = vsel %vm104, %v2344, 0.0
    %2347 = vadd.xlane.f32.xlu0 %v2346
    %v2348 = vpop.xlane.xlu0 %2347
    %v2349 = vsel %vm104, %v2345, 0.0
    %2350 = vadd.xlane.f32.xlu0 %v2349
    %v2351 = vpop.xlane.xlu0 %2350
    %v2352 = vmul.f32 %v2348, %v111
    %v2353 = vmul.f32 %v2351, %v111
    %v2354 = vadd.f32 %v2352, 1e-05
    %v2355 = vadd.f32 %v2353, 1e-05
    %v2356 = vrsqrt.pop %v2354
    %v2357 = vrsqrt.pop %v2355
    %v2358 = vmul.f32 %v2342, %v2356
    %v2359 = vmul.f32 %v2343, %v2357
    %v2360 = vld [vmem:[%s7] sm:$0x1]
    %v2362 = vlaneseq
    %v2363 = vshrl.u32 %v2362, 7
    %v2364 = vsub.s32 0, %v2363
    %v2365 = vrot.slane %v2360, %v2364
    %v2367 = vmul.f32 %v2358, %v2365
    %v2368 = vmul.f32 %v2359, %v2365
    %v2369 = vld [vmem:[%s8] sm:$0x1]
    %v2371 = vlaneseq
    %v2372 = vshrl.u32 %v2371, 7
    %v2373 = vsub.s32 0, %v2372
    %v2374 = vrot.slane %v2369, %v2373
    %v2376 = vadd.f32 %v2367, %v2374
    %v2377 = vadd.f32 %v2368, %v2374
    %v2378 = vpack.c.bf16 %v2377, %v2376
    %v2379 = vld [vmem:[%s9] sm:$0xf]
    %v2380 = vld [vmem:[%s9 + $0x4] sm:$0xf]
    %v2381 = vld [vmem:[%s9 + $0x8] sm:$0xf]
    %v2382 = vld [vmem:[%s9 + $0xc] sm:$0xf]
    %v2383 = vld [vmem:[%s10] sm:$0x1]
    %v2385 = vlaneseq
    %v2386 = vshrl.u32 %v2385, 7
    %v2387 = vsub.s32 0, %v2386
    %v2388 = vrot.slane %v2383, %v2387
    %v2394 = vunpack.c.l.b16 %v2379
    %v2395 = vunpack.c.l.b16 %v2380
    %v2396 = vunpack.c.l.b16 %v2381
    %v2397 = vunpack.c.l.b16 %v2382
    %v2398 = vpack.c.b16 %v2395, %v2394
    %v2399 = vpack.c.b16 %v2397, %v2396
    %v2403 = vsel %vm104, %v2378, 0
    %2405 = vmatprep.subr.bf16.mxu0 0
    %2406 = vmatpush1.bf16.msra.mxu0 0
    %2407 = vmatprep.subr.bf16.mxu0 0
    %2408 = vmatpush1.bf16.msra.mxu0 0
    %2409 = vmatprep.subr.bf16.mxu0 0
    %2410 = vmatpush1.bf16.msra.mxu0 0
    %2411 = vmatprep.subr.bf16.mxu0 0
    %2412 = vmatpush1.bf16.msra.mxu0 0
    %2413 = vmatprep.subr.bf16.mxu0 0
    %2414 = vmatpush1.bf16.msra.mxu0 0
    %2415 = vmatprep.subr.bf16.mxu0 0
    %2416 = vmatpush1.bf16.msra.mxu0 0
    %2417 = vmatprep.subr.bf16.mxu0 0
    %2418 = vmatpush1.bf16.msra.mxu0 %v2399
    %2419 = vmatprep.subr.bf16.mxu0 0
    %2420 = vmatpush1.bf16.msra.mxu0 %v2398
    %2421 = vmatprep.subr.bf16.mxu0 0
    %2422 = vmatpush2.bf16.msra.mxu0 0
    %2423 = vmatprep.subr.bf16.mxu0 0
    %2424 = vmatpush2.bf16.msra.mxu0 0
    %2425 = vmatprep.subr.bf16.mxu0 0
    %2426 = vmatpush2.bf16.msra.mxu0 0
    %2427 = vmatprep.subr.bf16.mxu0 0
    %2428 = vmatpush2.bf16.msra.mxu0 0
    %2429 = vmatprep.subr.bf16.mxu0 0
    %2430 = vmatpush2.bf16.msra.mxu0 0
    %2431 = vmatprep.subr.bf16.mxu0 0
    %2432 = vmatpush2.bf16.msra.mxu0 0
    %2433 = vmatprep.subr.bf16.mxu0 0
    %2434 = vmatpush2.bf16.msra.mxu0 0
    %2435 = vmatprep.subr.bf16.mxu0 0
    %2436 = vmatpush2.bf16.msra.mxu0 0
    %2437 = vmatprep.mubr.bf16.mxu0 0
    %2438 = vmatmul.mubr.bf16.gmra.mxu0 %v2403
    %v2439 = vpop.f32.mrf.mxu0
    %v2440 = vadd.f32 %v2388, %v2439
    %v2441 = vpop.f32.mrf.mxu0
    %v2442 = vpop.f32.mrf.mxu0
    %v2443 = vadd.f32 %v2388, %v2442
    %v2444 = vpop.f32.mrf.mxu0
    %2445 = vdwg.mxu0
    %v2446 = vmul.f32 %v2440, 1.702
    %v2447 = vmul.f32 %v2443, 1.702
    %v2448 = vxor.u32 %v2446, 2147483648
    %v2449 = vxor.u32 %v2447, 2147483648
    %v2450 = vmul.f32 %v2448, 1.442695
    %v2451 = vpow.pop %v2450
    %v2452 = vmul.f32 %v2449, 1.442695
    %v2453 = vpow.pop %v2452
    %v2454 = vadd.f32 %v2451, 1.0
    %v2455 = vadd.f32 %v2453, 1.0
    %v2456 = vrcp.pop %v2454
    %v2457 = vmul.f32 1.0, %v2456
    %v2458 = vrcp.pop %v2455
    %v2459 = vmul.f32 1.0, %v2458
    %v2460 = vmul.f32 %v2440, %v2457
    %v2461 = vmul.f32 %v2443, %v2459
    %v2462 = vpack.c.bf16 %v2461, %v2460
    %v2463 = vld [vmem:[%s11] sm:$0xf]
    %v2464 = vld [vmem:[%s11 + $0x4] sm:$0xf]
    %v2465 = vld [vmem:[%s11 + $0x8] sm:$0xf]
    %v2466 = vld [vmem:[%s11 + $0xc] sm:$0xf]
    %v2467 = vld [vmem:[%s11 + $0x10] sm:$0xf]
    %v2468 = vld [vmem:[%s11 + $0x14] sm:$0xf]
    %v2469 = vld [vmem:[%s11 + $0x18] sm:$0xf]
    %v2470 = vld [vmem:[%s11 + $0x1c] sm:$0xf]
    %v2471 = vld [vmem:[%s11 + $0x20] sm:$0xf]
    %v2472 = vld [vmem:[%s11 + $0x24] sm:$0xf]
    %v2473 = vld [vmem:[%s11 + $0x28] sm:$0xf]
    %v2474 = vld [vmem:[%s11 + $0x2c] sm:$0xf]
    %v2475 = vld [vmem:[%s11 + $0x30] sm:$0xf]
    %v2476 = vld [vmem:[%s11 + $0x34] sm:$0xf]
    %v2477 = vld [vmem:[%s11 + $0x38] sm:$0xf]
    %v2478 = vld [vmem:[%s11 + $0x3c] sm:$0xf]
    %v2479 = vld [vmem:[%s12] sm:$0x1]
    %v2481 = vlaneseq
    %v2482 = vshrl.u32 %v2481, 7
    %v2483 = vsub.s32 0, %v2482
    %v2484 = vrot.slane %v2479, %v2483
    %v2502 = vunpack.c.l.b16 %v2463
    %v2503 = vunpack.c.l.b16 %v2464
    %v2504 = vunpack.c.l.b16 %v2465
    %v2505 = vunpack.c.l.b16 %v2466
    %v2506 = vunpack.c.l.b16 %v2467
    %v2507 = vunpack.c.l.b16 %v2468
    %v2508 = vunpack.c.l.b16 %v2469
    %v2509 = vunpack.c.l.b16 %v2470
    %v2510 = vunpack.c.l.b16 %v2471
    %v2511 = vunpack.c.l.b16 %v2472
    %v2512 = vunpack.c.l.b16 %v2473
    %v2513 = vunpack.c.l.b16 %v2474
    %v2514 = vunpack.c.l.b16 %v2475
    %v2515 = vunpack.c.l.b16 %v2476
    %v2516 = vunpack.c.l.b16 %v2477
    %v2517 = vunpack.c.l.b16 %v2478
    %v2518 = vpack.c.b16 %v2503, %v2502
    %v2519 = vpack.c.b16 %v2505, %v2504
    %v2520 = vpack.c.b16 %v2507, %v2506
    %v2521 = vpack.c.b16 %v2509, %v2508
    %v2522 = vpack.c.b16 %v2511, %v2510
    %v2523 = vpack.c.b16 %v2513, %v2512
    %v2524 = vpack.c.b16 %v2515, %v2514
    %v2525 = vpack.c.b16 %v2517, %v2516
    %2534 = vmatprep.subr.bf16.mxu0 0
    %2535 = vmatpush1.bf16.msra.mxu0 %v2525
    %2536 = vmatprep.subr.bf16.mxu0 0
    %2537 = vmatpush1.bf16.msra.mxu0 %v2524
    %2538 = vmatprep.subr.bf16.mxu0 0
    %2539 = vmatpush1.bf16.msra.mxu0 %v2523
    %2540 = vmatprep.subr.bf16.mxu0 0
    %2541 = vmatpush1.bf16.msra.mxu0 %v2522
    %2542 = vmatprep.subr.bf16.mxu0 0
    %2543 = vmatpush1.bf16.msra.mxu0 %v2521
    %2544 = vmatprep.subr.bf16.mxu0 0
    %2545 = vmatpush1.bf16.msra.mxu0 %v2520
    %2546 = vmatprep.subr.bf16.mxu0 0
    %2547 = vmatpush1.bf16.msra.mxu0 %v2519
    %2548 = vmatprep.subr.bf16.mxu0 0
    %2549 = vmatpush1.bf16.msra.mxu0 %v2518
    %2550 = vmatprep.subr.bf16.mxu0 0
    %2551 = vmatpush2.bf16.msra.mxu0 0
    %2552 = vmatprep.subr.bf16.mxu0 0
    %2553 = vmatpush2.bf16.msra.mxu0 0
    %2554 = vmatprep.subr.bf16.mxu0 0
    %2555 = vmatpush2.bf16.msra.mxu0 0
    %2556 = vmatprep.subr.bf16.mxu0 0
    %2557 = vmatpush2.bf16.msra.mxu0 0
    %2558 = vmatprep.subr.bf16.mxu0 0
    %2559 = vmatpush2.bf16.msra.mxu0 0
    %2560 = vmatprep.subr.bf16.mxu0 0
    %2561 = vmatpush2.bf16.msra.mxu0 0
    %2562 = vmatprep.subr.bf16.mxu0 0
    %2563 = vmatpush2.bf16.msra.mxu0 0
    %2564 = vmatprep.subr.bf16.mxu0 0
    %2565 = vmatpush2.bf16.msra.mxu0 0
    %2566 = vmatprep.mubr.bf16.mxu0 0
    %2567 = vmatmul.mubr.bf16.gmra.mxu0 %v2462
    %v2568 = vpop.f32.mrf.mxu0
    %v2569 = vadd.f32 %v2484, %v2568
    %v2570 = vpop.f32.mrf.mxu0
    %v2571 = vpop.f32.mrf.mxu0
    %v2572 = vadd.f32 %v2484, %v2571
    %v2573 = vpop.f32.mrf.mxu0
    %2574 = vdwg.mxu0
    %v2575 = vadd.f32 %v2332, %v2569
    %v2576 = vadd.f32 %v2333, %v2572
    %v2577 = vcombine.high %v2575, 0.0
    %v2579 = vunpack.c.l.s4 1983009808
    %v2580 = vunpack.c.0.s8 %v2579
    %v2581 = vlaneseq
    %v2582 = vshrl.u32 %v2581, 7
    %v2583 = vsub.s32 %v2580, %v2582
    %v2584 = vrot.slane %v2575, %v2583
    %v2586 = vunpack.c.l.s4 1983009808
    %v2587 = vunpack.c.0.s8 %v2586
    %v2588 = vlaneseq
    %v2589 = vshrl.u32 %v2588, 7
    %v2590 = vsub.s32 %v2587, %v2589
    %v2591 = vrot.slane %v2577, %v2590
    %v2592 = vcombine.high %v2576, 0.0
    %v2594 = vunpack.c.l.s4 1983009808
    %v2595 = vunpack.c.0.s8 %v2594
    %v2596 = vlaneseq
    %v2597 = vshrl.u32 %v2596, 7
    %v2598 = vsub.s32 %v2595, %v2597
    %v2599 = vrot.slane %v2576, %v2598
    %v2601 = vunpack.c.l.s4 1983009808
    %v2602 = vunpack.c.0.s8 %v2601
    %v2603 = vlaneseq
    %v2604 = vshrl.u32 %v2603, 7
    %v2605 = vsub.s32 %v2602, %v2604
    %v2606 = vrot.slane %v2592, %v2605
    %v2607 = vcombine.low %v2584, %v2599
    %v2608 = vcombine.high %v2584, %v2599
    %v2610 = vunpack.c.l.s4 1934713408
    %v2611 = vunpack.c.0.s8 %v2610
    %v2612 = vlaneseq
    %v2613 = vshrl.u32 %v2612, 7
    %v2614 = vsub.s32 %v2611, %v2613
    %v2615 = vrot.slane %v2607, %v2614
    %v2617 = vunpack.c.l.s4 1934713408
    %v2618 = vunpack.c.0.s8 %v2617
    %v2619 = vlaneseq
    %v2620 = vshrl.u32 %v2619, 7
    %v2621 = vsub.s32 %v2618, %v2620
    %v2622 = vrot.slane %v2608, %v2621
    %v2623 = vcombine.low %v2591, %v2606
    %v2624 = vcombine.high %v2591, %v2606
    %v2626 = vunpack.c.l.s4 1934713408
    %v2627 = vunpack.c.0.s8 %v2626
    %v2628 = vlaneseq
    %v2629 = vshrl.u32 %v2628, 7
    %v2630 = vsub.s32 %v2627, %v2629
    %v2631 = vrot.slane %v2623, %v2630
    %v2633 = vunpack.c.l.s4 1934713408
    %v2634 = vunpack.c.0.s8 %v2633
    %v2635 = vlaneseq
    %v2636 = vshrl.u32 %v2635, 7
    %v2637 = vsub.s32 %v2634, %v2636
    %v2638 = vrot.slane %v2624, %v2637
    %v2639 = vcombine.high %v2615, 0.0
    %v2640 = vcombine.high %v2622, 0.0
    %v2641 = vcombine.high %v2631, 0.0
    %v2642 = vcombine.high %v2638, 0.0
    %vm2643 = vcmask 254976
    %2644 = vst.msk [vmem:[#allocation2] sm:$0x3] %vm2643, %v2615
    %2645 = vst.msk [vmem:[#allocation2 + $0x2] sm:$0x3] %vm2643, %v2639
    %2646 = vst.msk [vmem:[#allocation2 + $0x4] sm:$0x3] %vm2643, %v2622
    %2647 = vst.msk [vmem:[#allocation2 + $0x6] sm:$0x3] %vm2643, %v2640
    %2648 = vst.msk [vmem:[#allocation2 + $0x8] sm:$0x3] %vm2643, %v2631
    %2649 = vst.msk [vmem:[#allocation2 + $0xa] sm:$0x3] %vm2643, %v2641
    %2650 = vst.msk [vmem:[#allocation2 + $0xc] sm:$0x3] %vm2643, %v2638
    %2651 = vst.msk [vmem:[#allocation2 + $0xe] sm:$0x3] %vm2643, %v2642
    // Predicated region
    $region54: #{tpu_custom_call.1} parent=1 // pred_check
      _
    $region55: #{tpu_custom_call.1} parent=1 // pred_check_branch
      %2653 = sbr.rel (0) target = $region57
    $region56: #{tpu_custom_call.1} parent=1 // pred_region
      %s2655 = ssub.s32 256, 256
      %2656 = vsyncadd [#allocation3], %s2655
      %s2657 = sshll.u32 [#allocation2], 4
      %s2658 = int_to_ptr.vmem [resolvable:$true] %s2657
      %2663 = dma.vmem_to_hbm [thread:$0]  %s2658, 256, %s13, [#allocation3], 32, 32, 2
    $region57: #{tpu_custom_call.1} parent=1 // pred_fallthru
      _
    // Predicated region
    $region58: #{tpu_custom_call.1} parent=1 // pred_check
      _
    $region59: #{tpu_custom_call.1} parent=1 // pred_check_branch
      %2665 = sbr.rel (0) target = $region61
    $region60: #{tpu_custom_call.1} parent=1 // pred_region
      %2666 = dma.done [#allocation3], 256
    $region61: #{tpu_custom_call.1} parent=1 // pred_fallthru
      _
    %2667 = vsyncpa [#allocation3], 1

</llo_original>
